<compile_context>
chip_gen: v6e
topology: v6e:2x2x1
jax: 0.10.0
libtpu: 0.0.40
codegen_flags: <defaults>
</compile_context>

<pallas_src>
import jax
import jax.numpy as jnp
from jax.experimental import pallas as pl
from jax.experimental.pallas import tpu as pltpu

NUM_CHOICE = 5


# ----------------------------------------------------------------------------
# Fused kernel: vid_encoder (+residual) -> ques_encoder -> classifier
# One grid step processes a block of Bb (batch*choice) rows.
# ----------------------------------------------------------------------------
def trans_fused_kernel(v_ref, qf_ref, wq_ref, wk_ref, wv_ref, wo_ref,
                       wqp_ref, bqp_ref, wk2_ref, wv2_ref, wq2_ref, bfus_ref,
                       w1_ref, b1_ref, w2r_ref, b2_ref, out_ref):
    f32 = jnp.float32
    bf16 = jnp.bfloat16

    v3 = v_ref[...]                                    # (Bb, T, D) bf16
    Bb, T, D = v3.shape
    vf = v3.reshape(Bb * T, D)                         # flat view for projections

    # ---- vid_encoder: self-attention over objects -------------------------
    # Three separate (D,D) projections: each output starts at lane 0, so no
    # sub-128-lane slicing / relayout (fused-QKV slices at lanes 32/64 removed).
    qh = jnp.dot(vf, wq_ref[...], preferred_element_type=f32).reshape(Bb, T, D)
    kh = jnp.dot(vf, wk_ref[...], preferred_element_type=f32).reshape(Bb, T, D)
    vh = jnp.dot(vf, wv_ref[...], preferred_element_type=f32).reshape(Bb, T, D)

    # 1/sqrt(D) is pre-folded into wq (prepare_params).
    s = jnp.einsum('bqd,bkd->bqk', qh.astype(bf16), kh.astype(bf16),
                   preferred_element_type=f32)         # (Bb, T, T)
    s = s - jnp.max(s, axis=-1, keepdims=True)
    p = jnp.exp(s)
    p = p * pl.reciprocal(jnp.sum(p, axis=-1, keepdims=True), approx=True)
    att = jnp.einsum('bqk,bkd->bqd', p.astype(bf16), vh.astype(bf16),
                     preferred_element_type=f32)       # (Bb, T, D) f32

    # residual: vid_output = vid_encoder(v) + v
    vid_f = (jnp.dot(att.reshape(Bb * T, D).astype(bf16), wo_ref[...],
                     preferred_element_type=f32)
             + vf.astype(f32))                         # (Bb*T, D) f32
    vid3 = vid_f.reshape(Bb, T, D)

    # ---- ques_encoder: word/char projection + mean pool + cross-attention --
    qf = qf_ref[...]                                   # (Bb*S, E) bf16, pre-flattened
    H = wqp_ref.shape[1]
    S = qf.shape[0] // Bb
    qp = jnp.maximum(
        jnp.dot(qf, wqp_ref[...], preferred_element_type=f32) + bqp_ref[...],
        0.0)                                           # (Bb*S, H) f32
    q_pool = jnp.mean(qp.reshape(Bb, S, H), axis=1)    # (Bb, H) f32

    # 1/sqrt(H) is pre-folded into wk2 (prepare_params).
    keys3 = jnp.dot(vid_f.astype(bf16), wk2_ref[...],
                    preferred_element_type=f32).reshape(Bb, T, H)
    sc = jnp.sum(keys3 * q_pool[:, None, :], axis=-1)  # (Bb, T)
    sc = sc - jnp.max(sc, axis=-1, keepdims=True)
    a = jnp.exp(sc)
    a = a * pl.reciprocal(jnp.sum(a, axis=-1, keepdims=True), approx=True)
    v_att = jnp.sum(a[:, :, None] * vid3, axis=1)      # (Bb, D) f32

    # fusion: two lane-0-aligned (.,H) matmuls instead of a 64-lane concat input
    fused = jnp.maximum(
        jnp.dot(v_att.astype(bf16), wv2_ref[...], preferred_element_type=f32)
        + jnp.dot(q_pool.astype(bf16), wq2_ref[...], preferred_element_type=f32)
        + bfus_ref[...],
        0.0)                                           # (Bb, H)

    # ---- classifier MLP; final (H,1) projection as a lane reduction --------
    h = jnp.maximum(
        jnp.dot(fused.astype(bf16), w1_ref[...], preferred_element_type=f32)
        + b1_ref[...], 0.0)                            # (Bb, H)
    # Lane-dense store: the Bb logits land on the lane axis (unmasked vst).
    row = jnp.sum(h * w2r_ref[...], axis=-1)[None, :] + b2_ref[...]   # (1, Bb)
    out_ref[0] = row


# ----------------------------------------------------------------------------
# One-time weight preparation (hoisted out of the per-call jitted path).
# ----------------------------------------------------------------------------
def prepare_params(params):
    D = params['wq'].shape[0]
    H = params['w1'].shape[0]
    bf16 = jnp.bfloat16
    return dict(
        word_table=params['word_table'],
        char_table=params['char_table'],
        wq=(params['wq'] * (1.0 / float(D) ** 0.5)).astype(bf16),   # fold 1/sqrt(D)
        wk=params['wk'].astype(bf16),
        wv=params['wv'].astype(bf16),
        wo=params['wo'].astype(bf16),
        wqp=params['wqp'].astype(bf16),
        bqp=params['bqp'],
        wk2=(params['wk2'] * (1.0 / float(H) ** 0.5)).astype(bf16),  # fold 1/sqrt(H)
        wv2=params['wv2'].astype(bf16),
        wq2=params['wq2'].astype(bf16),
        bfus=params['bfus'],
        w1=params['w1'].astype(bf16),
        b1=params['b1'],
        w2r=params['w2'].T,                                          # (1, H) for lane reduce
        b2=params['b2'],
    )


def _choose_nblk(B, T, S):
    """Split the batch axis across TensorCores only on 2-TC chips (v7x) and
    only when each block still keeps the flattened matmul M (Bb*T) >= 128 and
    satisfies the (8,128) block-shape constraints.  v5e/v6e -> single step."""
    try:
        kind = jax.devices()[0].device_kind.lower()
    except Exception:
        kind = ""
    two_tc = ("v7" in kind) or ("7x" in kind)
    if (two_tc and B % 2 == 0
            and ((B // 2) * S) % 8 == 0
            and (B // 2) * T >= 128):
        return 2
    return 1


# ----------------------------------------------------------------------------
# TransModel.forward equivalent
# ----------------------------------------------------------------------------
def trans_model_forward(prepared, v, q_w, q_c, labels=None):
    B, T, D = v.shape
    S = q_w.shape[1]
    H = prepared['w1'].shape[0]

    # Embedding gathers stay as plain JAX glue (data-dependent gathers).
    # TODO(synk): could move in-kernel via scalar prefetch + VMEM tables (~8 KB).
    w_emb = prepared['word_table'][q_w]                      # (B, S, We)
    c_emb = jnp.mean(prepared['char_table'][q_c], axis=2)    # (B, S, Ce)
    q_emb = jnp.concatenate([w_emb, c_emb], axis=-1)         # (B, S, E)
    E = q_emb.shape[-1]

    # bf16 activations halve DMA/VMEM; accumulation stays f32 in-kernel.
    v16 = v.astype(jnp.bfloat16)
    qf = q_emb.reshape(B * S, E).astype(jnp.bfloat16)        # wrapper-side flatten

    nblk = _choose_nblk(B, T, S)
    Bb = B // nblk

    weights = [prepared[k] for k in
               ('wq', 'wk', 'wv', 'wo', 'wqp', 'bqp', 'wk2', 'wv2', 'wq2',
                'bfus', 'w1', 'b1', 'w2r', 'b2')]

    def full(a):
        return pl.BlockSpec(a.shape, lambda i, nd=a.ndim: (0,) * nd)

    # Rough per-step VMEM footprint (double-buffered inputs + weights + f32
    # intermediates) -- sized well under v7x's 64 MiB physical / 32 MiB scoped.
    est = (2 * (Bb * T * D + Bb * S * E) * 2
           + 2 * sum(int(w.size) * w.dtype.itemsize for w in weights)
           + (6 * Bb * T * D + 2 * Bb * T * T + Bb * S * H
              + 6 * Bb * max(D, H)) * 4)
    assert est < 32 * 1024 * 1024, f"VMEM estimate too large: {est}"

    out = pl.pallas_call(
        trans_fused_kernel,
        out_shape=jax.ShapeDtypeStruct((nblk, 1, Bb), jnp.float32),
        grid=(nblk,),
        in_specs=[pl.BlockSpec((Bb, T, D), lambda i: (i, 0, 0)),
                  pl.BlockSpec((Bb * S, E), lambda i: (i, 0))]
                 + [full(w) for w in weights],
        out_specs=pl.BlockSpec((1, 1, Bb), lambda i: (i, 0, 0)),
        compiler_params=pltpu.CompilerParams(
            dimension_semantics=("parallel",),
            vmem_limit_bytes=32 * 1024 * 1024),
    )(v16, qf, *weights)

    # logits.view(q_w.shape[0] / num_choice, num_choice)
    return out.reshape(B // NUM_CHOICE, NUM_CHOICE)


# ----------------------------------------------------------------------------
# Pure-JAX f32 reference (exact softmax) for tolerance checking.
# ----------------------------------------------------------------------------
def trans_model_reference(params, v, q_w, q_c):
    B, T, D = v.shape
    H = params['w1'].shape[0]
    w_emb = params['word_table'][q_w]
    c_emb = jnp.mean(params['char_table'][q_c], axis=2)
    q_emb = jnp.concatenate([w_emb, c_emb], axis=-1)

    qh = v @ params['wq']
    kh = v @ params['wk']
    vh = v @ params['wv']
    s = jnp.einsum('bqd,bkd->bqk', qh, kh) / (D ** 0.5)
    p = jax.nn.softmax(s, axis=-1)
    att = jnp.einsum('bqk,bkd->bqd', p, vh)
    vid = att @ params['wo'] + v

    qp = jax.nn.relu(q_emb @ params['wqp'] + params['bqp'])
    q_pool = jnp.mean(qp, axis=1)
    keys = vid @ params['wk2']
    sc = jnp.einsum('bth,bh->bt', keys, q_pool) / (H ** 0.5)
    a = jax.nn.softmax(sc, axis=-1)
    v_att = jnp.einsum('bt,btd->bd', a, vid)
    fused = jax.nn.relu(v_att @ params['wv2'] + q_pool @ params['wq2']
                        + params['bfus'])
    h = jax.nn.relu(fused @ params['w1'] + params['b1'])
    logits = h @ params['w2'] + params['b2']
    return logits.reshape(B // NUM_CHOICE, NUM_CHOICE)


def init_params(key, obj_dim=32, hidden=32, word_vocab=50, char_vocab=30,
                word_emb=32, char_emb=16):
    keys = jax.random.split(key, 12)

    def n(k, shape, scale=0.05):
        return (scale * jax.random.normal(k, shape)).astype(jnp.float32)

    E = word_emb + char_emb
    return dict(
        wq=n(keys[0], (obj_dim, obj_dim)),
        wk=n(keys[1], (obj_dim, obj_dim)),
        wv=n(keys[2], (obj_dim, obj_dim)),
        wo=n(keys[3], (obj_dim, obj_dim)),
        word_table=n(keys[4], (word_vocab, word_emb)),
        char_table=n(keys[5], (char_vocab, char_emb)),
        wqp=n(keys[6], (E, hidden)),
        bqp=jnp.zeros((1, hidden), jnp.float32),
        wk2=n(keys[7], (obj_dim, hidden)),
        wv2=n(keys[8], (obj_dim, hidden)),
        wq2=n(keys[9], (hidden, hidden)),
        bfus=jnp.zeros((1, hidden), jnp.float32),
        w1=n(keys[10], (hidden, hidden)),
        b1=jnp.zeros((1, hidden), jnp.float32),
        w2=n(keys[11], (hidden, 1)),
        b2=jnp.zeros((1, 1), jnp.float32),
    )


if __name__ == "__main__":
    key = jax.random.PRNGKey(0)
    k_param, k_v, k_qw, k_qc = jax.random.split(key, 4)

    batch = 2                  # number of questions
    B = batch * NUM_CHOICE     # rows after multi-choice tiling (as in evaluate())
    T, D = 8, 32               # num_objs, obj_dim
    S, C = 8, 4                # seq_length, chars-per-word
    word_vocab, char_vocab = 50, 30

    params = init_params(k_param, obj_dim=D, hidden=32,
                         word_vocab=word_vocab, char_vocab=char_vocab)
    prepared = prepare_params(params)   # one-time, outside the jitted path

    v = jax.random.normal(k_v, (B, T, D), dtype=jnp.float32)
    q_w = jax.random.randint(k_qw, (B, S), 0, word_vocab, dtype=jnp.int32)
    q_c = jax.random.randint(k_qc, (B, S, C), 0, char_vocab, dtype=jnp.int32)

    fwd = jax.jit(trans_model_forward)
    logits = fwd(prepared, v, q_w, q_c)
    jax.block_until_ready(logits)

    assert logits.shape == (batch, NUM_CHOICE), logits.shape
    assert bool(jnp.all(jnp.isfinite(logits)))

    # bf16-input / f32-accum kernel vs exact-f32 reference: tolerance-asserted.
    ref = trans_model_reference(params, v, q_w, q_c)
    max_err = float(jnp.max(jnp.abs(logits - ref)))
    assert max_err < 2e-2, f"max |kernel - ref| = {max_err}"

    print("KERNEL_OK")
</pallas_src>

<mosaic_0001>
module attributes {stable_mosaic.version = 11 : i64} {
  func.func @trans_fused_kernel(%arg0: i32, %arg1: memref<10x8x32xbf16, #tpu.memory_space<vmem>>, %arg2: memref<80x48xbf16, #tpu.memory_space<vmem>>, %arg3: memref<32x32xbf16, #tpu.memory_space<vmem>>, %arg4: memref<32x32xbf16, #tpu.memory_space<vmem>>, %arg5: memref<32x32xbf16, #tpu.memory_space<vmem>>, %arg6: memref<32x32xbf16, #tpu.memory_space<vmem>>, %arg7: memref<48x32xbf16, #tpu.memory_space<vmem>>, %arg8: memref<1x32xf32, #tpu.memory_space<vmem>>, %arg9: memref<32x32xbf16, #tpu.memory_space<vmem>>, %arg10: memref<32x32xbf16, #tpu.memory_space<vmem>>, %arg11: memref<32x32xbf16, #tpu.memory_space<vmem>>, %arg12: memref<1x32xf32, #tpu.memory_space<vmem>>, %arg13: memref<32x32xbf16, #tpu.memory_space<vmem>>, %arg14: memref<1x32xf32, #tpu.memory_space<vmem>>, %arg15: memref<1x32xf32, #tpu.memory_space<vmem>>, %arg16: memref<1x1xf32, #tpu.memory_space<vmem>>, %arg17: memref<1x1x10xf32, #tpu.memory_space<vmem>>) attributes {dimension_semantics = [#tpu.dimension_semantics<parallel>], iteration_bounds = array<i64: 1>, scalar_prefetch = 0 : i64, scratch_operands = 0 : i64, tpu.core_type = #tpu.core_type<tc>, window_params = [{transform_indices = @transform_0, window_bounds = array<i64: 10, 8, 32>}, {transform_indices = @transform_1, window_bounds = array<i64: 80, 48>}, {pipeline_mode = #tpu.pipeline_mode<synchronous>, transform_indices = @transform_2, window_bounds = array<i64: 32, 32>}, {pipeline_mode = #tpu.pipeline_mode<synchronous>, transform_indices = @transform_3, window_bounds = array<i64: 32, 32>}, {pipeline_mode = #tpu.pipeline_mode<synchronous>, transform_indices = @transform_4, window_bounds = array<i64: 32, 32>}, {pipeline_mode = #tpu.pipeline_mode<synchronous>, transform_indices = @transform_5, window_bounds = array<i64: 32, 32>}, {pipeline_mode = #tpu.pipeline_mode<synchronous>, transform_indices = @transform_6, window_bounds = array<i64: 48, 32>}, {pipeline_mode = #tpu.pipeline_mode<synchronous>, transform_indices = @transform_7, window_bounds = array<i64: 1, 32>}, {pipeline_mode = #tpu.pipeline_mode<synchronous>, transform_indices = @transform_8, window_bounds = array<i64: 32, 32>}, {pipeline_mode = #tpu.pipeline_mode<synchronous>, transform_indices = @transform_9, window_bounds = array<i64: 32, 32>}, {pipeline_mode = #tpu.pipeline_mode<synchronous>, transform_indices = @transform_10, window_bounds = array<i64: 32, 32>}, {pipeline_mode = #tpu.pipeline_mode<synchronous>, transform_indices = @transform_11, window_bounds = array<i64: 1, 32>}, {pipeline_mode = #tpu.pipeline_mode<synchronous>, transform_indices = @transform_12, window_bounds = array<i64: 32, 32>}, {pipeline_mode = #tpu.pipeline_mode<synchronous>, transform_indices = @transform_13, window_bounds = array<i64: 1, 32>}, {pipeline_mode = #tpu.pipeline_mode<synchronous>, transform_indices = @transform_14, window_bounds = array<i64: 1, 32>}, {pipeline_mode = #tpu.pipeline_mode<synchronous>, transform_indices = @transform_15, window_bounds = array<i64: 1, 1>}, {transform_indices = @transform_16, window_bounds = array<i64: 1, 1, 10>}]} {
    %c0 = arith.constant 0 : index
    %c0_0 = arith.constant 0 : index
    %c0_1 = arith.constant 0 : index
    %0 = vector.load %arg1[%c0, %c0_0, %c0_1] : memref<10x8x32xbf16, #tpu.memory_space<vmem>>, vector<10x8x32xbf16>
    %1 = vector.shape_cast %0 : vector<10x8x32xbf16> to vector<80x32xbf16>
    %c0_2 = arith.constant 0 : index
    %c0_3 = arith.constant 0 : index
    %2 = vector.load %arg3[%c0_2, %c0_3] : memref<32x32xbf16, #tpu.memory_space<vmem>>, vector<32x32xbf16>
    %cst = arith.constant dense<0.000000e+00> : vector<80x32xf32>
    %3 = tpu.matmul %1, %2, %cst {dimension_numbers = #tpu.dot_dimension_numbers<[1], [0], [0], [1], [0, 0, 1, 1], [], []>} : vector<80x32xbf16>, vector<32x32xbf16>, vector<80x32xf32> -> vector<80x32xf32>
    %4 = vector.shape_cast %3 : vector<80x32xf32> to vector<10x8x32xf32>
    %c0_4 = arith.constant 0 : index
    %c0_5 = arith.constant 0 : index
    %5 = vector.load %arg4[%c0_4, %c0_5] : memref<32x32xbf16, #tpu.memory_space<vmem>>, vector<32x32xbf16>
    %cst_6 = arith.constant dense<0.000000e+00> : vector<80x32xf32>
    %6 = tpu.matmul %1, %5, %cst_6 {dimension_numbers = #tpu.dot_dimension_numbers<[1], [0], [0], [1], [0, 0, 1, 1], [], []>} : vector<80x32xbf16>, vector<32x32xbf16>, vector<80x32xf32> -> vector<80x32xf32>
    %7 = vector.shape_cast %6 : vector<80x32xf32> to vector<10x8x32xf32>
    %c0_7 = arith.constant 0 : index
    %c0_8 = arith.constant 0 : index
    %8 = vector.load %arg5[%c0_7, %c0_8] : memref<32x32xbf16, #tpu.memory_space<vmem>>, vector<32x32xbf16>
    %cst_9 = arith.constant dense<0.000000e+00> : vector<80x32xf32>
    %9 = tpu.matmul %1, %8, %cst_9 {dimension_numbers = #tpu.dot_dimension_numbers<[1], [0], [0], [1], [0, 0, 1, 1], [], []>} : vector<80x32xbf16>, vector<32x32xbf16>, vector<80x32xf32> -> vector<80x32xf32>
    %10 = vector.shape_cast %9 : vector<80x32xf32> to vector<10x8x32xf32>
    %11 = arith.truncf %4 : vector<10x8x32xf32> to vector<10x8x32xbf16>
    %12 = arith.truncf %7 : vector<10x8x32xf32> to vector<10x8x32xbf16>
    "tpu.trace_start"() <{level = 10 : i32, message = "bqd,bkd->bqk"}> : () -> ()
    %cst_10 = arith.constant dense<0.000000e+00> : vector<10x8x8xf32>
    %13 = tpu.matmul %11, %12, %cst_10 {dimension_numbers = #tpu.dot_dimension_numbers<[2], [2], [1], [1], [0, 0, 0, 1, 1, 1], [0], [0]>} : vector<10x8x32xbf16>, vector<10x8x32xbf16>, vector<10x8x8xf32> -> vector<10x8x8xf32>
    "tpu.trace_stop"() : () -> ()
    %cst_11 = arith.constant dense<0xFF800000> : vector<10x8xf32>
    %14 = vector.multi_reduction <maximumf>, %13, %cst_11 [2] : vector<10x8x8xf32> to vector<10x8xf32>
    %15 = vector.shape_cast %14 : vector<10x8xf32> to vector<10x8x1xf32>
    %16 = vector.broadcast %15 : vector<10x8x1xf32> to vector<10x8x8xf32>
    %17 = arith.subf %13, %16 : vector<10x8x8xf32>
    %18 = math.exp %17 : vector<10x8x8xf32>
    %cst_12 = arith.constant dense<0.000000e+00> : vector<10x8xf32>
    %19 = vector.multi_reduction <add>, %18, %cst_12 [2] : vector<10x8x8xf32> to vector<10x8xf32>
    %20 = vector.shape_cast %19 : vector<10x8xf32> to vector<10x8x1xf32>
    %21 = tpu.reciprocal %20 {approx = true} : vector<10x8x1xf32> -> vector<10x8x1xf32>
    %22 = vector.broadcast %21 : vector<10x8x1xf32> to vector<10x8x8xf32>
    %23 = arith.mulf %18, %22 : vector<10x8x8xf32>
    %24 = arith.truncf %23 : vector<10x8x8xf32> to vector<10x8x8xbf16>
    %25 = arith.truncf %10 : vector<10x8x32xf32> to vector<10x8x32xbf16>
    "tpu.trace_start"() <{level = 10 : i32, message = "bqk,bkd->bqd"}> : () -> ()
    %cst_13 = arith.constant dense<0.000000e+00> : vector<10x8x32xf32>
    %26 = tpu.matmul %24, %25, %cst_13 {dimension_numbers = #tpu.dot_dimension_numbers<[2], [1], [1], [2], [0, 0, 0, 1, 1, 2], [0], [0]>} : vector<10x8x8xbf16>, vector<10x8x32xbf16>, vector<10x8x32xf32> -> vector<10x8x32xf32>
    "tpu.trace_stop"() : () -> ()
    %27 = vector.shape_cast %26 : vector<10x8x32xf32> to vector<80x32xf32>
    %28 = arith.truncf %27 : vector<80x32xf32> to vector<80x32xbf16>
    %c0_14 = arith.constant 0 : index
    %c0_15 = arith.constant 0 : index
    %29 = vector.load %arg6[%c0_14, %c0_15] : memref<32x32xbf16, #tpu.memory_space<vmem>>, vector<32x32xbf16>
    %cst_16 = arith.constant dense<0.000000e+00> : vector<80x32xf32>
    %30 = tpu.matmul %28, %29, %cst_16 {dimension_numbers = #tpu.dot_dimension_numbers<[1], [0], [0], [1], [0, 0, 1, 1], [], []>} : vector<80x32xbf16>, vector<32x32xbf16>, vector<80x32xf32> -> vector<80x32xf32>
    %31 = arith.extf %1 : vector<80x32xbf16> to vector<80x32xf32>
    %32 = arith.addf %30, %31 : vector<80x32xf32>
    %33 = vector.shape_cast %32 : vector<80x32xf32> to vector<10x8x32xf32>
    %c0_17 = arith.constant 0 : index
    %c0_18 = arith.constant 0 : index
    %34 = vector.load %arg2[%c0_17, %c0_18] : memref<80x48xbf16, #tpu.memory_space<vmem>>, vector<80x48xbf16>
    %c0_19 = arith.constant 0 : index
    %c0_20 = arith.constant 0 : index
    %35 = vector.load %arg7[%c0_19, %c0_20] : memref<48x32xbf16, #tpu.memory_space<vmem>>, vector<48x32xbf16>
    %cst_21 = arith.constant dense<0.000000e+00> : vector<80x32xf32>
    %36 = tpu.matmul %34, %35, %cst_21 {dimension_numbers = #tpu.dot_dimension_numbers<[1], [0], [0], [1], [0, 0, 1, 1], [], []>} : vector<80x48xbf16>, vector<48x32xbf16>, vector<80x32xf32> -> vector<80x32xf32>
    %c0_22 = arith.constant 0 : index
    %c0_23 = arith.constant 0 : index
    %37 = vector.load %arg8[%c0_22, %c0_23] : memref<1x32xf32, #tpu.memory_space<vmem>>, vector<1x32xf32>
    %38 = vector.broadcast %37 : vector<1x32xf32> to vector<80x32xf32>
    %39 = arith.addf %36, %38 : vector<80x32xf32>
    %cst_24 = arith.constant 0.000000e+00 : f32
    %40 = vector.broadcast %cst_24 : f32 to vector<80x32xf32>
    %41 = arith.maximumf %39, %40 : vector<80x32xf32>
    %42 = vector.shape_cast %41 : vector<80x32xf32> to vector<10x8x32xf32>
    %cst_25 = arith.constant dense<0.000000e+00> : vector<10x32xf32>
    %43 = vector.multi_reduction <add>, %42, %cst_25 [1] : vector<10x8x32xf32> to vector<10x32xf32>
    %cst_26 = arith.constant 8.000000e+00 : f32
    %44 = vector.broadcast %cst_26 : f32 to vector<10x32xf32>
    %45 = arith.divf %43, %44 : vector<10x32xf32>
    %46 = arith.truncf %32 : vector<80x32xf32> to vector<80x32xbf16>
    %c0_27 = arith.constant 0 : index
    %c0_28 = arith.constant 0 : index
    %47 = vector.load %arg9[%c0_27, %c0_28] : memref<32x32xbf16, #tpu.memory_space<vmem>>, vector<32x32xbf16>
    %cst_29 = arith.constant dense<0.000000e+00> : vector<80x32xf32>
    %48 = tpu.matmul %46, %47, %cst_29 {dimension_numbers = #tpu.dot_dimension_numbers<[1], [0], [0], [1], [0, 0, 1, 1], [], []>} : vector<80x32xbf16>, vector<32x32xbf16>, vector<80x32xf32> -> vector<80x32xf32>
    %49 = vector.shape_cast %48 : vector<80x32xf32> to vector<10x8x32xf32>
    %50 = vector.shape_cast %45 : vector<10x32xf32> to vector<10x1x32xf32>
    %51 = vector.broadcast %50 : vector<10x1x32xf32> to vector<10x8x32xf32>
    %52 = arith.mulf %49, %51 : vector<10x8x32xf32>
    %cst_30 = arith.constant dense<0.000000e+00> : vector<10x8xf32>
    %53 = vector.multi_reduction <add>, %52, %cst_30 [2] : vector<10x8x32xf32> to vector<10x8xf32>
    %cst_31 = arith.constant dense<0xFF800000> : vector<10xf32>
    %54 = vector.multi_reduction <maximumf>, %53, %cst_31 [1] : vector<10x8xf32> to vector<10xf32>
    %55 = vector.shape_cast %54 : vector<10xf32> to vector<10x1xf32>
    %56 = vector.broadcast %55 : vector<10x1xf32> to vector<10x8xf32>
    %57 = arith.subf %53, %56 : vector<10x8xf32>
    %58 = math.exp %57 : vector<10x8xf32>
    %cst_32 = arith.constant dense<0.000000e+00> : vector<10xf32>
    %59 = vector.multi_reduction <add>, %58, %cst_32 [1] : vector<10x8xf32> to vector<10xf32>
    %60 = vector.shape_cast %59 : vector<10xf32> to vector<10x1xf32>
    %61 = tpu.reciprocal %60 {approx = true} : vector<10x1xf32> -> vector<10x1xf32>
    %62 = vector.broadcast %61 : vector<10x1xf32> to vector<10x8xf32>
    %63 = arith.mulf %58, %62 : vector<10x8xf32>
    %64 = vector.shape_cast %63 : vector<10x8xf32> to vector<10x8x1xf32>
    %65 = vector.broadcast %64 : vector<10x8x1xf32> to vector<10x8x32xf32>
    %66 = arith.mulf %65, %33 : vector<10x8x32xf32>
    %cst_33 = arith.constant dense<0.000000e+00> : vector<10x32xf32>
    %67 = vector.multi_reduction <add>, %66, %cst_33 [1] : vector<10x8x32xf32> to vector<10x32xf32>
    %68 = arith.truncf %67 : vector<10x32xf32> to vector<10x32xbf16>
    %c0_34 = arith.constant 0 : index
    %c0_35 = arith.constant 0 : index
    %69 = vector.load %arg10[%c0_34, %c0_35] : memref<32x32xbf16, #tpu.memory_space<vmem>>, vector<32x32xbf16>
    %cst_36 = arith.constant dense<0.000000e+00> : vector<10x32xf32>
    %70 = tpu.matmul %68, %69, %cst_36 {dimension_numbers = #tpu.dot_dimension_numbers<[1], [0], [0], [1], [0, 0, 1, 1], [], []>} : vector<10x32xbf16>, vector<32x32xbf16>, vector<10x32xf32> -> vector<10x32xf32>
    %71 = arith.truncf %45 : vector<10x32xf32> to vector<10x32xbf16>
    %c0_37 = arith.constant 0 : index
    %c0_38 = arith.constant 0 : index
    %72 = vector.load %arg11[%c0_37, %c0_38] : memref<32x32xbf16, #tpu.memory_space<vmem>>, vector<32x32xbf16>
    %cst_39 = arith.constant dense<0.000000e+00> : vector<10x32xf32>
    %73 = tpu.matmul %71, %72, %cst_39 {dimension_numbers = #tpu.dot_dimension_numbers<[1], [0], [0], [1], [0, 0, 1, 1], [], []>} : vector<10x32xbf16>, vector<32x32xbf16>, vector<10x32xf32> -> vector<10x32xf32>
    %74 = arith.addf %70, %73 : vector<10x32xf32>
    %c0_40 = arith.constant 0 : index
    %c0_41 = arith.constant 0 : index
    %75 = vector.load %arg12[%c0_40, %c0_41] : memref<1x32xf32, #tpu.memory_space<vmem>>, vector<1x32xf32>
    %76 = vector.broadcast %75 : vector<1x32xf32> to vector<10x32xf32>
    %77 = arith.addf %74, %76 : vector<10x32xf32>
    %cst_42 = arith.constant 0.000000e+00 : f32
    %78 = vector.broadcast %cst_42 : f32 to vector<10x32xf32>
    %79 = arith.maximumf %77, %78 : vector<10x32xf32>
    %80 = arith.truncf %79 : vector<10x32xf32> to vector<10x32xbf16>
    %c0_43 = arith.constant 0 : index
    %c0_44 = arith.constant 0 : index
    %81 = vector.load %arg13[%c0_43, %c0_44] : memref<32x32xbf16, #tpu.memory_space<vmem>>, vector<32x32xbf16>
    %cst_45 = arith.constant dense<0.000000e+00> : vector<10x32xf32>
    %82 = tpu.matmul %80, %81, %cst_45 {dimension_numbers = #tpu.dot_dimension_numbers<[1], [0], [0], [1], [0, 0, 1, 1], [], []>} : vector<10x32xbf16>, vector<32x32xbf16>, vector<10x32xf32> -> vector<10x32xf32>
    %c0_46 = arith.constant 0 : index
    %c0_47 = arith.constant 0 : index
    %83 = vector.load %arg14[%c0_46, %c0_47] : memref<1x32xf32, #tpu.memory_space<vmem>>, vector<1x32xf32>
    %84 = vector.broadcast %83 : vector<1x32xf32> to vector<10x32xf32>
    %85 = arith.addf %82, %84 : vector<10x32xf32>
    %cst_48 = arith.constant 0.000000e+00 : f32
    %86 = vector.broadcast %cst_48 : f32 to vector<10x32xf32>
    %87 = arith.maximumf %85, %86 : vector<10x32xf32>
    %c0_49 = arith.constant 0 : index
    %c0_50 = arith.constant 0 : index
    %88 = vector.load %arg15[%c0_49, %c0_50] : memref<1x32xf32, #tpu.memory_space<vmem>>, vector<1x32xf32>
    %89 = vector.broadcast %88 : vector<1x32xf32> to vector<10x32xf32>
    %90 = arith.mulf %87, %89 : vector<10x32xf32>
    %cst_51 = arith.constant dense<0.000000e+00> : vector<10xf32>
    %91 = vector.multi_reduction <add>, %90, %cst_51 [1] : vector<10x32xf32> to vector<10xf32>
    %92 = vector.shape_cast %91 : vector<10xf32> to vector<1x10xf32>
    %c0_52 = arith.constant 0 : index
    %c0_53 = arith.constant 0 : index
    %93 = vector.load %arg16[%c0_52, %c0_53] : memref<1x1xf32, #tpu.memory_space<vmem>>, vector<1x1xf32>
    %94 = vector.broadcast %93 : vector<1x1xf32> to vector<1x10xf32>
    %95 = arith.addf %92, %94 : vector<1x10xf32>
    %c0_54 = arith.constant 0 : index
    %c0_55 = arith.constant 0 : index
    %c0_56 = arith.constant 0 : index
    %96 = vector.load %arg17[%c0_54, %c0_55, %c0_56] : memref<1x1x10xf32, #tpu.memory_space<vmem>>, vector<1x1x10xf32>
    %97 = vector.shape_cast %96 : vector<1x1x10xf32> to vector<1x10xf32>
    %98 = vector.shape_cast %95 : vector<1x10xf32> to vector<1x1x10xf32>
    tpu.vector_store %arg17[%c0_54, %c0_55, %c0_56], %98 {strides = array<i32>} : memref<1x1x10xf32, #tpu.memory_space<vmem>>, vector<1x1x10xf32>,
    return
  }
  func.func @transform_0(%arg0: i32) -> (i32, i32, i32) {
    %c0_i32 = arith.constant 0 : i32
    %c0_i32_0 = arith.constant 0 : i32
    %c0_i32_1 = arith.constant 0 : i32
    return %arg0, %c0_i32, %c0_i32_0 : i32, i32, i32
  }
  func.func @transform_1(%arg0: i32) -> (i32, i32) {
    %c0_i32 = arith.constant 0 : i32
    %c0_i32_0 = arith.constant 0 : i32
    return %arg0, %c0_i32 : i32, i32
  }
  func.func @transform_2(%arg0: i32) -> (i32, i32) {
    %c0_i32 = arith.constant 0 : i32
    %c0_i32_0 = arith.constant 0 : i32
    %c0_i32_1 = arith.constant 0 : i32
    return %c0_i32, %c0_i32_0 : i32, i32
  }
  func.func @transform_3(%arg0: i32) -> (i32, i32) {
    %c0_i32 = arith.constant 0 : i32
    %c0_i32_0 = arith.constant 0 : i32
    %c0_i32_1 = arith.constant 0 : i32
    return %c0_i32, %c0_i32_0 : i32, i32
  }
  func.func @transform_4(%arg0: i32) -> (i32, i32) {
    %c0_i32 = arith.constant 0 : i32
    %c0_i32_0 = arith.constant 0 : i32
    %c0_i32_1 = arith.constant 0 : i32
    return %c0_i32, %c0_i32_0 : i32, i32
  }
  func.func @transform_5(%arg0: i32) -> (i32, i32) {
    %c0_i32 = arith.constant 0 : i32
    %c0_i32_0 = arith.constant 0 : i32
    %c0_i32_1 = arith.constant 0 : i32
    return %c0_i32, %c0_i32_0 : i32, i32
  }
  func.func @transform_6(%arg0: i32) -> (i32, i32) {
    %c0_i32 = arith.constant 0 : i32
    %c0_i32_0 = arith.constant 0 : i32
    %c0_i32_1 = arith.constant 0 : i32
    return %c0_i32, %c0_i32_0 : i32, i32
  }
  func.func @transform_7(%arg0: i32) -> (i32, i32) {
    %c0_i32 = arith.constant 0 : i32
    %c0_i32_0 = arith.constant 0 : i32
    %c0_i32_1 = arith.constant 0 : i32
    return %c0_i32, %c0_i32_0 : i32, i32
  }
  func.func @transform_8(%arg0: i32) -> (i32, i32) {
    %c0_i32 = arith.constant 0 : i32
    %c0_i32_0 = arith.constant 0 : i32
    %c0_i32_1 = arith.constant 0 : i32
    return %c0_i32, %c0_i32_0 : i32, i32
  }
  func.func @transform_9(%arg0: i32) -> (i32, i32) {
    %c0_i32 = arith.constant 0 : i32
    %c0_i32_0 = arith.constant 0 : i32
    %c0_i32_1 = arith.constant 0 : i32
    return %c0_i32, %c0_i32_0 : i32, i32
  }
  func.func @transform_10(%arg0: i32) -> (i32, i32) {
    %c0_i32 = arith.constant 0 : i32
    %c0_i32_0 = arith.constant 0 : i32
    %c0_i32_1 = arith.constant 0 : i32
    return %c0_i32, %c0_i32_0 : i32, i32
  }
  func.func @transform_11(%arg0: i32) -> (i32, i32) {
    %c0_i32 = arith.constant 0 : i32
    %c0_i32_0 = arith.constant 0 : i32
    %c0_i32_1 = arith.constant 0 : i32
    return %c0_i32, %c0_i32_0 : i32, i32
  }
  func.func @transform_12(%arg0: i32) -> (i32, i32) {
    %c0_i32 = arith.constant 0 : i32
    %c0_i32_0 = arith.constant 0 : i32
    %c0_i32_1 = arith.constant 0 : i32
    return %c0_i32, %c0_i32_0 : i32, i32
  }
  func.func @transform_13(%arg0: i32) -> (i32, i32) {
    %c0_i32 = arith.constant 0 : i32
    %c0_i32_0 = arith.constant 0 : i32
    %c0_i32_1 = arith.constant 0 : i32
    return %c0_i32, %c0_i32_0 : i32, i32
  }
  func.func @transform_14(%arg0: i32) -> (i32, i32) {
    %c0_i32 = arith.constant 0 : i32
    %c0_i32_0 = arith.constant 0 : i32
    %c0_i32_1 = arith.constant 0 : i32
    return %c0_i32, %c0_i32_0 : i32, i32
  }
  func.func @transform_15(%arg0: i32) -> (i32, i32) {
    %c0_i32 = arith.constant 0 : i32
    %c0_i32_0 = arith.constant 0 : i32
    %c0_i32_1 = arith.constant 0 : i32
    return %c0_i32, %c0_i32_0 : i32, i32
  }
  func.func @transform_16(%arg0: i32) -> (i32, i32, i32) {
    %c0_i32 = arith.constant 0 : i32
    %c0_i32_0 = arith.constant 0 : i32
    %c0_i32_1 = arith.constant 0 : i32
    return %arg0, %c0_i32, %c0_i32_0 : i32, i32, i32
  }
}

</mosaic_0001>

<llo_original>
// kernel: trans_model_forward.1
$region0: #{trans_model_forward.1}
  #allocation0 [shape = 'u32[]', space=smem, size = 0x4, offset = 0x4, fixed_abs, tag = 'smem constant byte address 0x4 - core index']
  #allocation1 [shape = 'u32[144,128]{1,0:T(1,128)}', space=vmem, size = 0x12000, scoped, tag = 'internal scratch']
  #allocation2 [shape = 'f32[1,1]{1,0:T(1,128)S(1)}', space=vmem, size = 0x200, scoped, tag = 'scoped memory for trans_model_forward.1']
  %s0 = inlined_call_operand.vmem [shape: bf16[10,8,32], index: 0, kind: input, shape index: {}]
  %s1 = inlined_call_operand.vmem [shape: bf16[80,48], index: 1, kind: input, shape index: {}]
  %s2 = inlined_call_operand.vmem [shape: bf16[32,32], index: 2, kind: input, shape index: {}]
  %s3 = inlined_call_operand.vmem [shape: bf16[32,32], index: 3, kind: input, shape index: {}]
  %s4 = inlined_call_operand.vmem [shape: bf16[32,32], index: 4, kind: input, shape index: {}]
  %s5 = inlined_call_operand.vmem [shape: bf16[32,32], index: 5, kind: input, shape index: {}]
  %s6 = inlined_call_operand.vmem [shape: bf16[48,32], index: 6, kind: input, shape index: {}]
  %s7 = inlined_call_operand.vmem [shape: f32[1,32], index: 7, kind: input, shape index: {}]
  %s8 = inlined_call_operand.vmem [shape: bf16[32,32], index: 8, kind: input, shape index: {}]
  %s9 = inlined_call_operand.vmem [shape: bf16[32,32], index: 9, kind: input, shape index: {}]
  %s10 = inlined_call_operand.vmem [shape: bf16[32,32], index: 10, kind: input, shape index: {}]
  %s11 = inlined_call_operand.vmem [shape: f32[1,32], index: 11, kind: input, shape index: {}]
  %s12 = inlined_call_operand.vmem [shape: bf16[32,32], index: 12, kind: input, shape index: {}]
  %s13 = inlined_call_operand.vmem [shape: f32[1,32], index: 13, kind: input, shape index: {}]
  %s14 = inlined_call_operand.vmem [shape: f32[1,32], index: 14, kind: input, shape index: {}]
  %s15 = inlined_call_operand.<no memory space> [shape: f32[1,1], index: 15, kind: input, shape index: {}]
  %s16 = inlined_call_operand.vmem [shape: f32[1,1,10], index: 16, kind: output, shape index: {}]
  %s17 = sld [smem:[#allocation0]]
  $region74: #{trans_model_forward.1} parent=0
    _
  %s19 = ssub.s32 1, %s17
  %s20 = scalar_select 0, %s19, %s17
  %v21 = vstv %s15
  %22 = vst [vmem:[#allocation2] sm:$0x1] %v21
  // Predicated region
  $region2: #{trans_model_forward.1} parent=0 // pred_check
    _
  $region3: #{trans_model_forward.1} parent=0 // pred_check_branch
    %24 = sbr.rel (0) target = $region5
  $region4: #{trans_model_forward.1} parent=0 // pred_region
    _
  $region5: #{trans_model_forward.1} parent=0 // pred_fallthru
    _
  // Predicated region
  $region6: #{trans_model_forward.1} parent=0 // pred_check
    _
  $region7: #{trans_model_forward.1} parent=0 // pred_check_branch
    %26 = sbr.rel (0) target = $region9
  $region8: #{trans_model_forward.1} parent=0 // pred_region
    _
  $region9: #{trans_model_forward.1} parent=0 // pred_fallthru
    _
  // Predicated region
  $region10: #{trans_model_forward.1} parent=0 // pred_check
    _
  $region11: #{trans_model_forward.1} parent=0 // pred_check_branch
    %28 = sbr.rel (0) target = $region13
  $region12: #{trans_model_forward.1} parent=0 // pred_region
    _
  $region13: #{trans_model_forward.1} parent=0 // pred_fallthru
    _
  // Predicated region
  $region14: #{trans_model_forward.1} parent=0 // pred_check
    _
  $region15: #{trans_model_forward.1} parent=0 // pred_check_branch
    %30 = sbr.rel (0) target = $region17
  $region16: #{trans_model_forward.1} parent=0 // pred_region
    _
  $region17: #{trans_model_forward.1} parent=0 // pred_fallthru
    _
  // Predicated region
  $region18: #{trans_model_forward.1} parent=0 // pred_check
    _
  $region19: #{trans_model_forward.1} parent=0 // pred_check_branch
    %32 = sbr.rel (0) target = $region21
  $region20: #{trans_model_forward.1} parent=0 // pred_region
    _
  $region21: #{trans_model_forward.1} parent=0 // pred_fallthru
    _
  // Predicated region
  $region22: #{trans_model_forward.1} parent=0 // pred_check
    _
  $region23: #{trans_model_forward.1} parent=0 // pred_check_branch
    %34 = sbr.rel (0) target = $region25
  $region24: #{trans_model_forward.1} parent=0 // pred_region
    _
  $region25: #{trans_model_forward.1} parent=0 // pred_fallthru
    _
  // Predicated region
  $region26: #{trans_model_forward.1} parent=0 // pred_check
    _
  $region27: #{trans_model_forward.1} parent=0 // pred_check_branch
    %36 = sbr.rel (0) target = $region29
  $region28: #{trans_model_forward.1} parent=0 // pred_region
    _
  $region29: #{trans_model_forward.1} parent=0 // pred_fallthru
    _
  // Predicated region
  $region30: #{trans_model_forward.1} parent=0 // pred_check
    _
  $region31: #{trans_model_forward.1} parent=0 // pred_check_branch
    %38 = sbr.rel (0) target = $region33
  $region32: #{trans_model_forward.1} parent=0 // pred_region
    _
  $region33: #{trans_model_forward.1} parent=0 // pred_fallthru
    _
  // Predicated region
  $region34: #{trans_model_forward.1} parent=0 // pred_check
    _
  $region35: #{trans_model_forward.1} parent=0 // pred_check_branch
    %40 = sbr.rel (0) target = $region37
  $region36: #{trans_model_forward.1} parent=0 // pred_region
    _
  $region37: #{trans_model_forward.1} parent=0 // pred_fallthru
    _
  // Predicated region
  $region38: #{trans_model_forward.1} parent=0 // pred_check
    _
  $region39: #{trans_model_forward.1} parent=0 // pred_check_branch
    %42 = sbr.rel (0) target = $region41
  $region40: #{trans_model_forward.1} parent=0 // pred_region
    _
  $region41: #{trans_model_forward.1} parent=0 // pred_fallthru
    _
  // Predicated region
  $region42: #{trans_model_forward.1} parent=0 // pred_check
    _
  $region43: #{trans_model_forward.1} parent=0 // pred_check_branch
    %44 = sbr.rel (0) target = $region45
  $region44: #{trans_model_forward.1} parent=0 // pred_region
    _
  $region45: #{trans_model_forward.1} parent=0 // pred_fallthru
    _
  // Predicated region
  $region46: #{trans_model_forward.1} parent=0 // pred_check
    _
  $region47: #{trans_model_forward.1} parent=0 // pred_check_branch
    %46 = sbr.rel (0) target = $region49
  $region48: #{trans_model_forward.1} parent=0 // pred_region
    _
  $region49: #{trans_model_forward.1} parent=0 // pred_fallthru
    _
  // Predicated region
  $region50: #{trans_model_forward.1} parent=0 // pred_check
    _
  $region51: #{trans_model_forward.1} parent=0 // pred_check_branch
    %48 = sbr.rel (0) target = $region53
  $region52: #{trans_model_forward.1} parent=0 // pred_region
    _
  $region53: #{trans_model_forward.1} parent=0 // pred_fallthru
    _
  // Predicated region
  $region54: #{trans_model_forward.1} parent=0 // pred_check
    _
  $region55: #{trans_model_forward.1} parent=0 // pred_check_branch
    %50 = sbr.rel (0) target = $region57
  $region56: #{trans_model_forward.1} parent=0 // pred_region
    _
  $region57: #{trans_model_forward.1} parent=0 // pred_fallthru
    _
  // Predicated region
  $region58: #{trans_model_forward.1} parent=0 // pred_check
    _
  $region59: #{trans_model_forward.1} parent=0 // pred_check_branch
    %52 = sbr.rel (0) target = $region61
  $region60: #{trans_model_forward.1} parent=0 // pred_region
    _
  $region61: #{trans_model_forward.1} parent=0 // pred_fallthru
    _
  // Predicated region
  $region62: #{trans_model_forward.1} parent=0 // pred_check
    _
  $region63: #{trans_model_forward.1} parent=0 // pred_check_branch
    %54 = sbr.rel (0) target = $region65
  $region64: #{trans_model_forward.1} parent=0 // pred_region
    _
  $region65: #{trans_model_forward.1} parent=0 // pred_fallthru
    _
  %v56 = vld [vmem:[%s0] sm:$0xf]
  %v57 = vld [vmem:[%s0 + $0x4] sm:$0xf]
  %v58 = vld [vmem:[%s0 + $0x8] sm:$0xf]
  %v59 = vld [vmem:[%s0 + $0xc] sm:$0xf]
  %v60 = vld [vmem:[%s0 + $0x10] sm:$0xf]
  %v61 = vld [vmem:[%s0 + $0x14] sm:$0xf]
  %v62 = vld [vmem:[%s0 + $0x18] sm:$0xf]
  %v63 = vld [vmem:[%s0 + $0x1c] sm:$0xf]
  %v64 = vld [vmem:[%s0 + $0x20] sm:$0xf]
  %v65 = vld [vmem:[%s0 + $0x24] sm:$0xf]
  %v66 = vld [vmem:[%s2] sm:$0xf]
  %v67 = vld [vmem:[%s2 + $0x4] sm:$0xf]
  %v68 = vld [vmem:[%s2 + $0x8] sm:$0xf]
  %v69 = vld [vmem:[%s2 + $0xc] sm:$0xf]
  %v80 = vunpack.c.l.b16 %v56
  %v81 = vunpack.c.l.b16 %v57
  %v82 = vunpack.c.l.b16 %v58
  %v83 = vunpack.c.l.b16 %v59
  %v84 = vunpack.c.l.b16 %v60
  %v85 = vunpack.c.l.b16 %v61
  %v86 = vunpack.c.l.b16 %v62
  %v87 = vunpack.c.l.b16 %v63
  %v88 = vunpack.c.l.b16 %v64
  %v89 = vunpack.c.l.b16 %v65
  %v90 = vpack.c.b16 %v81, %v80
  %v91 = vpack.c.b16 %v83, %v82
  %v92 = vpack.c.b16 %v85, %v84
  %v93 = vpack.c.b16 %v87, %v86
  %v94 = vpack.c.b16 %v89, %v88
  %v99 = vunpack.c.l.b16 %v66
  %v100 = vunpack.c.l.b16 %v67
  %v101 = vunpack.c.l.b16 %v68
  %v102 = vunpack.c.l.b16 %v69
  %v103 = vpack.c.b16 %v100, %v99
  %v104 = vpack.c.b16 %v102, %v101
  %vm107 = vcmask 261120
  %v109 = vsel %vm107, %v90, 0
  %v112 = vsel %vm107, %v91, 0
  %v115 = vsel %vm107, %v92, 0
  %v118 = vsel %vm107, %v93, 0
  %v121 = vsel %vm107, %v94, 0
  %123 = vmatprep.subr.bf16.mxu0 0
  %124 = vmatpush1.bf16.msra.mxu0 0
  %125 = vmatprep.subr.bf16.mxu0 0
  %126 = vmatpush1.bf16.msra.mxu0 0
  %127 = vmatprep.subr.bf16.mxu0 0
  %128 = vmatpush1.bf16.msra.mxu0 0
  %129 = vmatprep.subr.bf16.mxu0 0
  %130 = vmatpush1.bf16.msra.mxu0 0
  %131 = vmatprep.subr.bf16.mxu0 0
  %132 = vmatpush1.bf16.msra.mxu0 0
  %133 = vmatprep.subr.bf16.mxu0 0
  %134 = vmatpush1.bf16.msra.mxu0 0
  %135 = vmatprep.subr.bf16.mxu0 0
  %136 = vmatpush1.bf16.msra.mxu0 %v104
  %137 = vmatprep.subr.bf16.mxu0 0
  %138 = vmatpush1.bf16.msra.mxu0 %v103
  %139 = vmatprep.subr.bf16.mxu0 0
  %140 = vmatpush2.bf16.msra.mxu0 0
  %141 = vmatprep.subr.bf16.mxu0 0
  %142 = vmatpush2.bf16.msra.mxu0 0
  %143 = vmatprep.subr.bf16.mxu0 0
  %144 = vmatpush2.bf16.msra.mxu0 0
  %145 = vmatprep.subr.bf16.mxu0 0
  %146 = vmatpush2.bf16.msra.mxu0 0
  %147 = vmatprep.subr.bf16.mxu0 0
  %148 = vmatpush2.bf16.msra.mxu0 0
  %149 = vmatprep.subr.bf16.mxu0 0
  %150 = vmatpush2.bf16.msra.mxu0 0
  %151 = vmatprep.subr.bf16.mxu0 0
  %152 = vmatpush2.bf16.msra.mxu0 0
  %153 = vmatprep.subr.bf16.mxu0 0
  %154 = vmatpush2.bf16.msra.mxu0 0
  %155 = vmatprep.mubr.bf16.mxu0 0
  %156 = vmatmul.mubr.bf16.gmra.mxu0 %v109
  %v157 = vpop.f32.mrf.mxu0
  %v158 = vadd.f32 0.0, %v157
  %v159 = vpop.f32.mrf.mxu0
  %v160 = vpop.f32.mrf.mxu0
  %v161 = vadd.f32 0.0, %v160
  %v162 = vpop.f32.mrf.mxu0
  %163 = vmatprep.mubr.bf16.mxu0 0
  %164 = vmatmul.mubr.bf16.gmra.mxu0 %v112
  %v165 = vpop.f32.mrf.mxu0
  %v166 = vadd.f32 0.0, %v165
  %v167 = vpop.f32.mrf.mxu0
  %v168 = vpop.f32.mrf.mxu0
  %v169 = vadd.f32 0.0, %v168
  %v170 = vpop.f32.mrf.mxu0
  %171 = vmatprep.mubr.bf16.mxu0 0
  %172 = vmatmul.mubr.bf16.gmra.mxu0 %v115
  %v173 = vpop.f32.mrf.mxu0
  %v174 = vadd.f32 0.0, %v173
  %v175 = vpop.f32.mrf.mxu0
  %v176 = vpop.f32.mrf.mxu0
  %v177 = vadd.f32 0.0, %v176
  %v178 = vpop.f32.mrf.mxu0
  %179 = vmatprep.mubr.bf16.mxu0 0
  %180 = vmatmul.mubr.bf16.gmra.mxu0 %v118
  %v181 = vpop.f32.mrf.mxu0
  %v182 = vadd.f32 0.0, %v181
  %v183 = vpop.f32.mrf.mxu0
  %v184 = vpop.f32.mrf.mxu0
  %v185 = vadd.f32 0.0, %v184
  %v186 = vpop.f32.mrf.mxu0
  %187 = vmatprep.mubr.bf16.mxu0 0
  %188 = vmatmul.mubr.bf16.gmra.mxu0 %v121
  %v189 = vpop.f32.mrf.mxu0
  %v190 = vadd.f32 0.0, %v189
  %v191 = vpop.f32.mrf.mxu0
  %v192 = vpop.f32.mrf.mxu0
  %v193 = vadd.f32 0.0, %v192
  %v194 = vpop.f32.mrf.mxu0
  %195 = vdwg.mxu0
  %v196 = vld [vmem:[%s3] sm:$0xf]
  %v197 = vld [vmem:[%s3 + $0x4] sm:$0xf]
  %v198 = vld [vmem:[%s3 + $0x8] sm:$0xf]
  %v199 = vld [vmem:[%s3 + $0xc] sm:$0xf]
  %v204 = vunpack.c.l.b16 %v196
  %v205 = vunpack.c.l.b16 %v197
  %v206 = vunpack.c.l.b16 %v198
  %v207 = vunpack.c.l.b16 %v199
  %v208 = vpack.c.b16 %v205, %v204
  %v209 = vpack.c.b16 %v207, %v206
  %212 = vmatprep.subr.bf16.mxu0 0
  %213 = vmatpush1.bf16.msra.mxu0 0
  %214 = vmatprep.subr.bf16.mxu0 0
  %215 = vmatpush1.bf16.msra.mxu0 0
  %216 = vmatprep.subr.bf16.mxu0 0
  %217 = vmatpush1.bf16.msra.mxu0 0
  %218 = vmatprep.subr.bf16.mxu0 0
  %219 = vmatpush1.bf16.msra.mxu0 0
  %220 = vmatprep.subr.bf16.mxu0 0
  %221 = vmatpush1.bf16.msra.mxu0 0
  %222 = vmatprep.subr.bf16.mxu0 0
  %223 = vmatpush1.bf16.msra.mxu0 0
  %224 = vmatprep.subr.bf16.mxu0 0
  %225 = vmatpush1.bf16.msra.mxu0 %v209
  %226 = vmatprep.subr.bf16.mxu0 0
  %227 = vmatpush1.bf16.msra.mxu0 %v208
  %228 = vmatprep.subr.bf16.mxu0 0
  %229 = vmatpush2.bf16.msra.mxu0 0
  %230 = vmatprep.subr.bf16.mxu0 0
  %231 = vmatpush2.bf16.msra.mxu0 0
  %232 = vmatprep.subr.bf16.mxu0 0
  %233 = vmatpush2.bf16.msra.mxu0 0
  %234 = vmatprep.subr.bf16.mxu0 0
  %235 = vmatpush2.bf16.msra.mxu0 0
  %236 = vmatprep.subr.bf16.mxu0 0
  %237 = vmatpush2.bf16.msra.mxu0 0
  %238 = vmatprep.subr.bf16.mxu0 0
  %239 = vmatpush2.bf16.msra.mxu0 0
  %240 = vmatprep.subr.bf16.mxu0 0
  %241 = vmatpush2.bf16.msra.mxu0 0
  %242 = vmatprep.subr.bf16.mxu0 0
  %243 = vmatpush2.bf16.msra.mxu0 0
  %244 = vmatprep.mubr.bf16.mxu0 0
  %245 = vmatmul.mubr.bf16.gmra.mxu0 %v109
  %v246 = vpop.f32.mrf.mxu0
  %v247 = vadd.f32 0.0, %v246
  %v248 = vpop.f32.mrf.mxu0
  %v249 = vpop.f32.mrf.mxu0
  %v250 = vadd.f32 0.0, %v249
  %v251 = vpop.f32.mrf.mxu0
  %252 = vmatprep.mubr.bf16.mxu0 0
  %253 = vmatmul.mubr.bf16.gmra.mxu0 %v112
  %v254 = vpop.f32.mrf.mxu0
  %v255 = vadd.f32 0.0, %v254
  %v256 = vpop.f32.mrf.mxu0
  %v257 = vpop.f32.mrf.mxu0
  %v258 = vadd.f32 0.0, %v257
  %v259 = vpop.f32.mrf.mxu0
  %260 = vmatprep.mubr.bf16.mxu0 0
  %261 = vmatmul.mubr.bf16.gmra.mxu0 %v115
  %v262 = vpop.f32.mrf.mxu0
  %v263 = vadd.f32 0.0, %v262
  %v264 = vpop.f32.mrf.mxu0
  %v265 = vpop.f32.mrf.mxu0
  %v266 = vadd.f32 0.0, %v265
  %v267 = vpop.f32.mrf.mxu0
  %268 = vmatprep.mubr.bf16.mxu0 0
  %269 = vmatmul.mubr.bf16.gmra.mxu0 %v118
  %v270 = vpop.f32.mrf.mxu0
  %v271 = vadd.f32 0.0, %v270
  %v272 = vpop.f32.mrf.mxu0
  %v273 = vpop.f32.mrf.mxu0
  %v274 = vadd.f32 0.0, %v273
  %v275 = vpop.f32.mrf.mxu0
  %276 = vmatprep.mubr.bf16.mxu0 0
  %277 = vmatmul.mubr.bf16.gmra.mxu0 %v121
  %v278 = vpop.f32.mrf.mxu0
  %v279 = vadd.f32 0.0, %v278
  %v280 = vpop.f32.mrf.mxu0
  %v281 = vpop.f32.mrf.mxu0
  %v282 = vadd.f32 0.0, %v281
  %v283 = vpop.f32.mrf.mxu0
  %284 = vdwg.mxu0
  %v285 = vld [vmem:[%s4] sm:$0xf]
  %v286 = vld [vmem:[%s4 + $0x4] sm:$0xf]
  %v287 = vld [vmem:[%s4 + $0x8] sm:$0xf]
  %v288 = vld [vmem:[%s4 + $0xc] sm:$0xf]
  %v293 = vunpack.c.l.b16 %v285
  %v294 = vunpack.c.l.b16 %v286
  %v295 = vunpack.c.l.b16 %v287
  %v296 = vunpack.c.l.b16 %v288
  %v297 = vpack.c.b16 %v294, %v293
  %v298 = vpack.c.b16 %v296, %v295
  %301 = vmatprep.subr.bf16.mxu0 0
  %302 = vmatpush1.bf16.msra.mxu0 0
  %303 = vmatprep.subr.bf16.mxu0 0
  %304 = vmatpush1.bf16.msra.mxu0 0
  %305 = vmatprep.subr.bf16.mxu0 0
  %306 = vmatpush1.bf16.msra.mxu0 0
  %307 = vmatprep.subr.bf16.mxu0 0
  %308 = vmatpush1.bf16.msra.mxu0 0
  %309 = vmatprep.subr.bf16.mxu0 0
  %310 = vmatpush1.bf16.msra.mxu0 0
  %311 = vmatprep.subr.bf16.mxu0 0
  %312 = vmatpush1.bf16.msra.mxu0 0
  %313 = vmatprep.subr.bf16.mxu0 0
  %314 = vmatpush1.bf16.msra.mxu0 %v298
  %315 = vmatprep.subr.bf16.mxu0 0
  %316 = vmatpush1.bf16.msra.mxu0 %v297
  %317 = vmatprep.subr.bf16.mxu0 0
  %318 = vmatpush2.bf16.msra.mxu0 0
  %319 = vmatprep.subr.bf16.mxu0 0
  %320 = vmatpush2.bf16.msra.mxu0 0
  %321 = vmatprep.subr.bf16.mxu0 0
  %322 = vmatpush2.bf16.msra.mxu0 0
  %323 = vmatprep.subr.bf16.mxu0 0
  %324 = vmatpush2.bf16.msra.mxu0 0
  %325 = vmatprep.subr.bf16.mxu0 0
  %326 = vmatpush2.bf16.msra.mxu0 0
  %327 = vmatprep.subr.bf16.mxu0 0
  %328 = vmatpush2.bf16.msra.mxu0 0
  %329 = vmatprep.subr.bf16.mxu0 0
  %330 = vmatpush2.bf16.msra.mxu0 0
  %331 = vmatprep.subr.bf16.mxu0 0
  %332 = vmatpush2.bf16.msra.mxu0 0
  %333 = vmatprep.mubr.bf16.mxu0 0
  %334 = vmatmul.mubr.bf16.gmra.mxu0 %v109
  %v335 = vpop.f32.mrf.mxu0
  %v336 = vadd.f32 0.0, %v335
  %v337 = vpop.f32.mrf.mxu0
  %v338 = vpop.f32.mrf.mxu0
  %v339 = vadd.f32 0.0, %v338
  %v340 = vpop.f32.mrf.mxu0
  %341 = vmatprep.mubr.bf16.mxu0 0
  %342 = vmatmul.mubr.bf16.gmra.mxu0 %v112
  %v343 = vpop.f32.mrf.mxu0
  %v344 = vadd.f32 0.0, %v343
  %v345 = vpop.f32.mrf.mxu0
  %v346 = vpop.f32.mrf.mxu0
  %v347 = vadd.f32 0.0, %v346
  %v348 = vpop.f32.mrf.mxu0
  %349 = vmatprep.mubr.bf16.mxu0 0
  %350 = vmatmul.mubr.bf16.gmra.mxu0 %v115
  %v351 = vpop.f32.mrf.mxu0
  %v352 = vadd.f32 0.0, %v351
  %v353 = vpop.f32.mrf.mxu0
  %v354 = vpop.f32.mrf.mxu0
  %v355 = vadd.f32 0.0, %v354
  %v356 = vpop.f32.mrf.mxu0
  %357 = vmatprep.mubr.bf16.mxu0 0
  %358 = vmatmul.mubr.bf16.gmra.mxu0 %v118
  %v359 = vpop.f32.mrf.mxu0
  %v360 = vadd.f32 0.0, %v359
  %v361 = vpop.f32.mrf.mxu0
  %v362 = vpop.f32.mrf.mxu0
  %v363 = vadd.f32 0.0, %v362
  %v364 = vpop.f32.mrf.mxu0
  %365 = vmatprep.mubr.bf16.mxu0 0
  %366 = vmatmul.mubr.bf16.gmra.mxu0 %v121
  %v367 = vpop.f32.mrf.mxu0
  %v368 = vadd.f32 0.0, %v367
  %v369 = vpop.f32.mrf.mxu0
  %v370 = vpop.f32.mrf.mxu0
  %v371 = vadd.f32 0.0, %v370
  %v372 = vpop.f32.mrf.mxu0
  %373 = vdwg.mxu0
  %v374 = vpack.c.bf16 %v158, %v158
  %v375 = vpack.c.bf16 %v161, %v161
  %v376 = vpack.c.bf16 %v166, %v166
  %v377 = vpack.c.bf16 %v169, %v169
  %v378 = vpack.c.bf16 %v174, %v174
  %v379 = vpack.c.bf16 %v177, %v177
  %v380 = vpack.c.bf16 %v182, %v182
  %v381 = vpack.c.bf16 %v185, %v185
  %v382 = vpack.c.bf16 %v190, %v190
  %v383 = vpack.c.bf16 %v193, %v193
  %v384 = vpack.c.bf16 %v247, %v247
  %v385 = vpack.c.bf16 %v250, %v250
  %v386 = vpack.c.bf16 %v255, %v255
  %v387 = vpack.c.bf16 %v258, %v258
  %v388 = vpack.c.bf16 %v263, %v263
  %v389 = vpack.c.bf16 %v266, %v266
  %v390 = vpack.c.bf16 %v271, %v271
  %v391 = vpack.c.bf16 %v274, %v274
  %v392 = vpack.c.bf16 %v279, %v279
  %v393 = vpack.c.bf16 %v282, %v282
  %v395 = vsel %vm107, %v374, 0
  %v398 = vsel %vm107, %v384, 0
  %400 = vmatprep.subr.bf16.mxu0 0
  %401 = vmatpush1.bf16.xpose.msra.mxu0 0
  %402 = vmatprep.subr.bf16.mxu0 0
  %403 = vmatpush1.bf16.xpose.msra.mxu0 0
  %404 = vmatprep.subr.bf16.mxu0 0
  %405 = vmatpush1.bf16.xpose.msra.mxu0 0
  %406 = vmatprep.subr.bf16.mxu0 0
  %407 = vmatpush1.bf16.xpose.msra.mxu0 0
  %408 = vmatprep.subr.bf16.mxu0 0
  %409 = vmatpush1.bf16.xpose.msra.mxu0 0
  %410 = vmatprep.subr.bf16.mxu0 0
  %411 = vmatpush1.bf16.xpose.msra.mxu0 0
  %412 = vmatprep.subr.bf16.mxu0 0
  %413 = vmatpush1.bf16.xpose.msra.mxu0 0
  %414 = vmatprep.subr.bf16.mxu0 0
  %415 = vmatpush1.bf16.xpose.msra.mxu0 %v398
  %416 = vmatprep.subr.bf16.mxu0 0
  %417 = vmatpush2.bf16.xpose.msra.mxu0 0
  %418 = vmatprep.subr.bf16.mxu0 0
  %419 = vmatpush2.bf16.xpose.msra.mxu0 0
  %420 = vmatprep.subr.bf16.mxu0 0
  %421 = vmatpush2.bf16.xpose.msra.mxu0 0
  %422 = vmatprep.subr.bf16.mxu0 0
  %423 = vmatpush2.bf16.xpose.msra.mxu0 0
  %424 = vmatprep.subr.bf16.mxu0 0
  %425 = vmatpush2.bf16.xpose.msra.mxu0 0
  %426 = vmatprep.subr.bf16.mxu0 0
  %427 = vmatpush2.bf16.xpose.msra.mxu0 0
  %428 = vmatprep.subr.bf16.mxu0 0
  %429 = vmatpush2.bf16.xpose.msra.mxu0 0
  %430 = vmatprep.subr.bf16.mxu0 0
  %431 = vmatpush2.bf16.xpose.msra.mxu0 0
  %432 = vmatprep.mubr.bf16.mxu0 0
  %433 = vmatmul.mubr.bf16.gmra.mxu0 %v395
  %v434 = vpop.f32.mrf.mxu0
  %v435 = vadd.f32 0.0, %v434
  %v436 = vpop.f32.mrf.mxu0
  %v437 = vpop.f32.mrf.mxu0
  %v438 = vpop.f32.mrf.mxu0
  %439 = vdwg.mxu0
  %v441 = vsel %vm107, %v375, 0
  %v444 = vsel %vm107, %v385, 0
  %446 = vmatprep.subr.bf16.mxu0 0
  %447 = vmatpush1.bf16.xpose.msra.mxu0 0
  %448 = vmatprep.subr.bf16.mxu0 0
  %449 = vmatpush1.bf16.xpose.msra.mxu0 0
  %450 = vmatprep.subr.bf16.mxu0 0
  %451 = vmatpush1.bf16.xpose.msra.mxu0 0
  %452 = vmatprep.subr.bf16.mxu0 0
  %453 = vmatpush1.bf16.xpose.msra.mxu0 0
  %454 = vmatprep.subr.bf16.mxu0 0
  %455 = vmatpush1.bf16.xpose.msra.mxu0 0
  %456 = vmatprep.subr.bf16.mxu0 0
  %457 = vmatpush1.bf16.xpose.msra.mxu0 0
  %458 = vmatprep.subr.bf16.mxu0 0
  %459 = vmatpush1.bf16.xpose.msra.mxu0 0
  %460 = vmatprep.subr.bf16.mxu0 0
  %461 = vmatpush1.bf16.xpose.msra.mxu0 %v444
  %462 = vmatprep.subr.bf16.mxu0 0
  %463 = vmatpush2.bf16.xpose.msra.mxu0 0
  %464 = vmatprep.subr.bf16.mxu0 0
  %465 = vmatpush2.bf16.xpose.msra.mxu0 0
  %466 = vmatprep.subr.bf16.mxu0 0
  %467 = vmatpush2.bf16.xpose.msra.mxu0 0
  %468 = vmatprep.subr.bf16.mxu0 0
  %469 = vmatpush2.bf16.xpose.msra.mxu0 0
  %470 = vmatprep.subr.bf16.mxu0 0
  %471 = vmatpush2.bf16.xpose.msra.mxu0 0
  %472 = vmatprep.subr.bf16.mxu0 0
  %473 = vmatpush2.bf16.xpose.msra.mxu0 0
  %474 = vmatprep.subr.bf16.mxu0 0
  %475 = vmatpush2.bf16.xpose.msra.mxu0 0
  %476 = vmatprep.subr.bf16.mxu0 0
  %477 = vmatpush2.bf16.xpose.msra.mxu0 0
  %478 = vmatprep.mubr.bf16.mxu0 0
  %479 = vmatmul.mubr.bf16.gmra.mxu0 %v441
  %v480 = vpop.f32.mrf.mxu0
  %v481 = vadd.f32 0.0, %v480
  %v482 = vpop.f32.mrf.mxu0
  %v483 = vpop.f32.mrf.mxu0
  %v484 = vpop.f32.mrf.mxu0
  %485 = vdwg.mxu0
  %v487 = vsel %vm107, %v376, 0
  %v490 = vsel %vm107, %v386, 0
  %492 = vmatprep.subr.bf16.mxu0 0
  %493 = vmatpush1.bf16.xpose.msra.mxu0 0
  %494 = vmatprep.subr.bf16.mxu0 0
  %495 = vmatpush1.bf16.xpose.msra.mxu0 0
  %496 = vmatprep.subr.bf16.mxu0 0
  %497 = vmatpush1.bf16.xpose.msra.mxu0 0
  %498 = vmatprep.subr.bf16.mxu0 0
  %499 = vmatpush1.bf16.xpose.msra.mxu0 0
  %500 = vmatprep.subr.bf16.mxu0 0
  %501 = vmatpush1.bf16.xpose.msra.mxu0 0
  %502 = vmatprep.subr.bf16.mxu0 0
  %503 = vmatpush1.bf16.xpose.msra.mxu0 0
  %504 = vmatprep.subr.bf16.mxu0 0
  %505 = vmatpush1.bf16.xpose.msra.mxu0 0
  %506 = vmatprep.subr.bf16.mxu0 0
  %507 = vmatpush1.bf16.xpose.msra.mxu0 %v490
  %508 = vmatprep.subr.bf16.mxu0 0
  %509 = vmatpush2.bf16.xpose.msra.mxu0 0
  %510 = vmatprep.subr.bf16.mxu0 0
  %511 = vmatpush2.bf16.xpose.msra.mxu0 0
  %512 = vmatprep.subr.bf16.mxu0 0
  %513 = vmatpush2.bf16.xpose.msra.mxu0 0
  %514 = vmatprep.subr.bf16.mxu0 0
  %515 = vmatpush2.bf16.xpose.msra.mxu0 0
  %516 = vmatprep.subr.bf16.mxu0 0
  %517 = vmatpush2.bf16.xpose.msra.mxu0 0
  %518 = vmatprep.subr.bf16.mxu0 0
  %519 = vmatpush2.bf16.xpose.msra.mxu0 0
  %520 = vmatprep.subr.bf16.mxu0 0
  %521 = vmatpush2.bf16.xpose.msra.mxu0 0
  %522 = vmatprep.subr.bf16.mxu0 0
  %523 = vmatpush2.bf16.xpose.msra.mxu0 0
  %524 = vmatprep.mubr.bf16.mxu0 0
  %525 = vmatmul.mubr.bf16.gmra.mxu0 %v487
  %v526 = vpop.f32.mrf.mxu0
  %v527 = vadd.f32 0.0, %v526
  %v528 = vpop.f32.mrf.mxu0
  %v529 = vpop.f32.mrf.mxu0
  %v530 = vpop.f32.mrf.mxu0
  %531 = vdwg.mxu0
  %v533 = vsel %vm107, %v377, 0
  %v536 = vsel %vm107, %v387, 0
  %538 = vmatprep.subr.bf16.mxu0 0
  %539 = vmatpush1.bf16.xpose.msra.mxu0 0
  %540 = vmatprep.subr.bf16.mxu0 0
  %541 = vmatpush1.bf16.xpose.msra.mxu0 0
  %542 = vmatprep.subr.bf16.mxu0 0
  %543 = vmatpush1.bf16.xpose.msra.mxu0 0
  %544 = vmatprep.subr.bf16.mxu0 0
  %545 = vmatpush1.bf16.xpose.msra.mxu0 0
  %546 = vmatprep.subr.bf16.mxu0 0
  %547 = vmatpush1.bf16.xpose.msra.mxu0 0
  %548 = vmatprep.subr.bf16.mxu0 0
  %549 = vmatpush1.bf16.xpose.msra.mxu0 0
  %550 = vmatprep.subr.bf16.mxu0 0
  %551 = vmatpush1.bf16.xpose.msra.mxu0 0
  %552 = vmatprep.subr.bf16.mxu0 0
  %553 = vmatpush1.bf16.xpose.msra.mxu0 %v536
  %554 = vmatprep.subr.bf16.mxu0 0
  %555 = vmatpush2.bf16.xpose.msra.mxu0 0
  %556 = vmatprep.subr.bf16.mxu0 0
  %557 = vmatpush2.bf16.xpose.msra.mxu0 0
  %558 = vmatprep.subr.bf16.mxu0 0
  %559 = vmatpush2.bf16.xpose.msra.mxu0 0
  %560 = vmatprep.subr.bf16.mxu0 0
  %561 = vmatpush2.bf16.xpose.msra.mxu0 0
  %562 = vmatprep.subr.bf16.mxu0 0
  %563 = vmatpush2.bf16.xpose.msra.mxu0 0
  %564 = vmatprep.subr.bf16.mxu0 0
  %565 = vmatpush2.bf16.xpose.msra.mxu0 0
  %566 = vmatprep.subr.bf16.mxu0 0
  %567 = vmatpush2.bf16.xpose.msra.mxu0 0
  %568 = vmatprep.subr.bf16.mxu0 0
  %569 = vmatpush2.bf16.xpose.msra.mxu0 0
  %570 = vmatprep.mubr.bf16.mxu0 0
  %571 = vmatmul.mubr.bf16.gmra.mxu0 %v533
  %v572 = vpop.f32.mrf.mxu0
  %v573 = vadd.f32 0.0, %v572
  %v574 = vpop.f32.mrf.mxu0
  %v575 = vpop.f32.mrf.mxu0
  %v576 = vpop.f32.mrf.mxu0
  %577 = vdwg.mxu0
  %v579 = vsel %vm107, %v378, 0
  %v582 = vsel %vm107, %v388, 0
  %584 = vmatprep.subr.bf16.mxu0 0
  %585 = vmatpush1.bf16.xpose.msra.mxu0 0
  %586 = vmatprep.subr.bf16.mxu0 0
  %587 = vmatpush1.bf16.xpose.msra.mxu0 0
  %588 = vmatprep.subr.bf16.mxu0 0
  %589 = vmatpush1.bf16.xpose.msra.mxu0 0
  %590 = vmatprep.subr.bf16.mxu0 0
  %591 = vmatpush1.bf16.xpose.msra.mxu0 0
  %592 = vmatprep.subr.bf16.mxu0 0
  %593 = vmatpush1.bf16.xpose.msra.mxu0 0
  %594 = vmatprep.subr.bf16.mxu0 0
  %595 = vmatpush1.bf16.xpose.msra.mxu0 0
  %596 = vmatprep.subr.bf16.mxu0 0
  %597 = vmatpush1.bf16.xpose.msra.mxu0 0
  %598 = vmatprep.subr.bf16.mxu0 0
  %599 = vmatpush1.bf16.xpose.msra.mxu0 %v582
  %600 = vmatprep.subr.bf16.mxu0 0
  %601 = vmatpush2.bf16.xpose.msra.mxu0 0
  %602 = vmatprep.subr.bf16.mxu0 0
  %603 = vmatpush2.bf16.xpose.msra.mxu0 0
  %604 = vmatprep.subr.bf16.mxu0 0
  %605 = vmatpush2.bf16.xpose.msra.mxu0 0
  %606 = vmatprep.subr.bf16.mxu0 0
  %607 = vmatpush2.bf16.xpose.msra.mxu0 0
  %608 = vmatprep.subr.bf16.mxu0 0
  %609 = vmatpush2.bf16.xpose.msra.mxu0 0
  %610 = vmatprep.subr.bf16.mxu0 0
  %611 = vmatpush2.bf16.xpose.msra.mxu0 0
  %612 = vmatprep.subr.bf16.mxu0 0
  %613 = vmatpush2.bf16.xpose.msra.mxu0 0
  %614 = vmatprep.subr.bf16.mxu0 0
  %615 = vmatpush2.bf16.xpose.msra.mxu0 0
  %616 = vmatprep.mubr.bf16.mxu0 0
  %617 = vmatmul.mubr.bf16.gmra.mxu0 %v579
  %v618 = vpop.f32.mrf.mxu0
  %v619 = vadd.f32 0.0, %v618
  %v620 = vpop.f32.mrf.mxu0
  %v621 = vpop.f32.mrf.mxu0
  %v622 = vpop.f32.mrf.mxu0
  %623 = vdwg.mxu0
  %v625 = vsel %vm107, %v379, 0
  %v628 = vsel %vm107, %v389, 0
  %630 = vmatprep.subr.bf16.mxu0 0
  %631 = vmatpush1.bf16.xpose.msra.mxu0 0
  %632 = vmatprep.subr.bf16.mxu0 0
  %633 = vmatpush1.bf16.xpose.msra.mxu0 0
  %634 = vmatprep.subr.bf16.mxu0 0
  %635 = vmatpush1.bf16.xpose.msra.mxu0 0
  %636 = vmatprep.subr.bf16.mxu0 0
  %637 = vmatpush1.bf16.xpose.msra.mxu0 0
  %638 = vmatprep.subr.bf16.mxu0 0
  %639 = vmatpush1.bf16.xpose.msra.mxu0 0
  %640 = vmatprep.subr.bf16.mxu0 0
  %641 = vmatpush1.bf16.xpose.msra.mxu0 0
  %642 = vmatprep.subr.bf16.mxu0 0
  %643 = vmatpush1.bf16.xpose.msra.mxu0 0
  %644 = vmatprep.subr.bf16.mxu0 0
  %645 = vmatpush1.bf16.xpose.msra.mxu0 %v628
  %646 = vmatprep.subr.bf16.mxu0 0
  %647 = vmatpush2.bf16.xpose.msra.mxu0 0
  %648 = vmatprep.subr.bf16.mxu0 0
  %649 = vmatpush2.bf16.xpose.msra.mxu0 0
  %650 = vmatprep.subr.bf16.mxu0 0
  %651 = vmatpush2.bf16.xpose.msra.mxu0 0
  %652 = vmatprep.subr.bf16.mxu0 0
  %653 = vmatpush2.bf16.xpose.msra.mxu0 0
  %654 = vmatprep.subr.bf16.mxu0 0
  %655 = vmatpush2.bf16.xpose.msra.mxu0 0
  %656 = vmatprep.subr.bf16.mxu0 0
  %657 = vmatpush2.bf16.xpose.msra.mxu0 0
  %658 = vmatprep.subr.bf16.mxu0 0
  %659 = vmatpush2.bf16.xpose.msra.mxu0 0
  %660 = vmatprep.subr.bf16.mxu0 0
  %661 = vmatpush2.bf16.xpose.msra.mxu0 0
  %662 = vmatprep.mubr.bf16.mxu0 0
  %663 = vmatmul.mubr.bf16.gmra.mxu0 %v625
  %v664 = vpop.f32.mrf.mxu0
  %v665 = vadd.f32 0.0, %v664
  %v666 = vpop.f32.mrf.mxu0
  %v667 = vpop.f32.mrf.mxu0
  %v668 = vpop.f32.mrf.mxu0
  %669 = vdwg.mxu0
  %v671 = vsel %vm107, %v380, 0
  %v674 = vsel %vm107, %v390, 0
  %676 = vmatprep.subr.bf16.mxu0 0
  %677 = vmatpush1.bf16.xpose.msra.mxu0 0
  %678 = vmatprep.subr.bf16.mxu0 0
  %679 = vmatpush1.bf16.xpose.msra.mxu0 0
  %680 = vmatprep.subr.bf16.mxu0 0
  %681 = vmatpush1.bf16.xpose.msra.mxu0 0
  %682 = vmatprep.subr.bf16.mxu0 0
  %683 = vmatpush1.bf16.xpose.msra.mxu0 0
  %684 = vmatprep.subr.bf16.mxu0 0
  %685 = vmatpush1.bf16.xpose.msra.mxu0 0
  %686 = vmatprep.subr.bf16.mxu0 0
  %687 = vmatpush1.bf16.xpose.msra.mxu0 0
  %688 = vmatprep.subr.bf16.mxu0 0
  %689 = vmatpush1.bf16.xpose.msra.mxu0 0
  %690 = vmatprep.subr.bf16.mxu0 0
  %691 = vmatpush1.bf16.xpose.msra.mxu0 %v674
  %692 = vmatprep.subr.bf16.mxu0 0
  %693 = vmatpush2.bf16.xpose.msra.mxu0 0
  %694 = vmatprep.subr.bf16.mxu0 0
  %695 = vmatpush2.bf16.xpose.msra.mxu0 0
  %696 = vmatprep.subr.bf16.mxu0 0
  %697 = vmatpush2.bf16.xpose.msra.mxu0 0
  %698 = vmatprep.subr.bf16.mxu0 0
  %699 = vmatpush2.bf16.xpose.msra.mxu0 0
  %700 = vmatprep.subr.bf16.mxu0 0
  %701 = vmatpush2.bf16.xpose.msra.mxu0 0
  %702 = vmatprep.subr.bf16.mxu0 0
  %703 = vmatpush2.bf16.xpose.msra.mxu0 0
  %704 = vmatprep.subr.bf16.mxu0 0
  %705 = vmatpush2.bf16.xpose.msra.mxu0 0
  %706 = vmatprep.subr.bf16.mxu0 0
  %707 = vmatpush2.bf16.xpose.msra.mxu0 0
  %708 = vmatprep.mubr.bf16.mxu0 0
  %709 = vmatmul.mubr.bf16.gmra.mxu0 %v671
  %v710 = vpop.f32.mrf.mxu0
  %v711 = vadd.f32 0.0, %v710
  %v712 = vpop.f32.mrf.mxu0
  %v713 = vpop.f32.mrf.mxu0
  %v714 = vpop.f32.mrf.mxu0
  %715 = vdwg.mxu0
  %v717 = vsel %vm107, %v381, 0
  %v720 = vsel %vm107, %v391, 0
  %722 = vmatprep.subr.bf16.mxu0 0
  %723 = vmatpush1.bf16.xpose.msra.mxu0 0
  %724 = vmatprep.subr.bf16.mxu0 0
  %725 = vmatpush1.bf16.xpose.msra.mxu0 0
  %726 = vmatprep.subr.bf16.mxu0 0
  %727 = vmatpush1.bf16.xpose.msra.mxu0 0
  %728 = vmatprep.subr.bf16.mxu0 0
  %729 = vmatpush1.bf16.xpose.msra.mxu0 0
  %730 = vmatprep.subr.bf16.mxu0 0
  %731 = vmatpush1.bf16.xpose.msra.mxu0 0
  %732 = vmatprep.subr.bf16.mxu0 0
  %733 = vmatpush1.bf16.xpose.msra.mxu0 0
  %734 = vmatprep.subr.bf16.mxu0 0
  %735 = vmatpush1.bf16.xpose.msra.mxu0 0
  %736 = vmatprep.subr.bf16.mxu0 0
  %737 = vmatpush1.bf16.xpose.msra.mxu0 %v720
  %738 = vmatprep.subr.bf16.mxu0 0
  %739 = vmatpush2.bf16.xpose.msra.mxu0 0
  %740 = vmatprep.subr.bf16.mxu0 0
  %741 = vmatpush2.bf16.xpose.msra.mxu0 0
  %742 = vmatprep.subr.bf16.mxu0 0
  %743 = vmatpush2.bf16.xpose.msra.mxu0 0
  %744 = vmatprep.subr.bf16.mxu0 0
  %745 = vmatpush2.bf16.xpose.msra.mxu0 0
  %746 = vmatprep.subr.bf16.mxu0 0
  %747 = vmatpush2.bf16.xpose.msra.mxu0 0
  %748 = vmatprep.subr.bf16.mxu0 0
  %749 = vmatpush2.bf16.xpose.msra.mxu0 0
  %750 = vmatprep.subr.bf16.mxu0 0
  %751 = vmatpush2.bf16.xpose.msra.mxu0 0
  %752 = vmatprep.subr.bf16.mxu0 0
  %753 = vmatpush2.bf16.xpose.msra.mxu0 0
  %754 = vmatprep.mubr.bf16.mxu0 0
  %755 = vmatmul.mubr.bf16.gmra.mxu0 %v717
  %v756 = vpop.f32.mrf.mxu0
  %v757 = vadd.f32 0.0, %v756
  %v758 = vpop.f32.mrf.mxu0
  %v759 = vpop.f32.mrf.mxu0
  %v760 = vpop.f32.mrf.mxu0
  %761 = vdwg.mxu0
  %v763 = vsel %vm107, %v382, 0
  %v766 = vsel %vm107, %v392, 0
  %768 = vmatprep.subr.bf16.mxu0 0
  %769 = vmatpush1.bf16.xpose.msra.mxu0 0
  %770 = vmatprep.subr.bf16.mxu0 0
  %771 = vmatpush1.bf16.xpose.msra.mxu0 0
  %772 = vmatprep.subr.bf16.mxu0 0
  %773 = vmatpush1.bf16.xpose.msra.mxu0 0
  %774 = vmatprep.subr.bf16.mxu0 0
  %775 = vmatpush1.bf16.xpose.msra.mxu0 0
  %776 = vmatprep.subr.bf16.mxu0 0
  %777 = vmatpush1.bf16.xpose.msra.mxu0 0
  %778 = vmatprep.subr.bf16.mxu0 0
  %779 = vmatpush1.bf16.xpose.msra.mxu0 0
  %780 = vmatprep.subr.bf16.mxu0 0
  %781 = vmatpush1.bf16.xpose.msra.mxu0 0
  %782 = vmatprep.subr.bf16.mxu0 0
  %783 = vmatpush1.bf16.xpose.msra.mxu0 %v766
  %784 = vmatprep.subr.bf16.mxu0 0
  %785 = vmatpush2.bf16.xpose.msra.mxu0 0
  %786 = vmatprep.subr.bf16.mxu0 0
  %787 = vmatpush2.bf16.xpose.msra.mxu0 0
  %788 = vmatprep.subr.bf16.mxu0 0
  %789 = vmatpush2.bf16.xpose.msra.mxu0 0
  %790 = vmatprep.subr.bf16.mxu0 0
  %791 = vmatpush2.bf16.xpose.msra.mxu0 0
  %792 = vmatprep.subr.bf16.mxu0 0
  %793 = vmatpush2.bf16.xpose.msra.mxu0 0
  %794 = vmatprep.subr.bf16.mxu0 0
  %795 = vmatpush2.bf16.xpose.msra.mxu0 0
  %796 = vmatprep.subr.bf16.mxu0 0
  %797 = vmatpush2.bf16.xpose.msra.mxu0 0
  %798 = vmatprep.subr.bf16.mxu0 0
  %799 = vmatpush2.bf16.xpose.msra.mxu0 0
  %800 = vmatprep.mubr.bf16.mxu0 0
  %801 = vmatmul.mubr.bf16.gmra.mxu0 %v763
  %v802 = vpop.f32.mrf.mxu0
  %v803 = vadd.f32 0.0, %v802
  %v804 = vpop.f32.mrf.mxu0
  %v805 = vpop.f32.mrf.mxu0
  %v806 = vpop.f32.mrf.mxu0
  %807 = vdwg.mxu0
  %v809 = vsel %vm107, %v383, 0
  %v812 = vsel %vm107, %v393, 0
  %814 = vmatprep.subr.bf16.mxu0 0
  %815 = vmatpush1.bf16.xpose.msra.mxu0 0
  %816 = vmatprep.subr.bf16.mxu0 0
  %817 = vmatpush1.bf16.xpose.msra.mxu0 0
  %818 = vmatprep.subr.bf16.mxu0 0
  %819 = vmatpush1.bf16.xpose.msra.mxu0 0
  %820 = vmatprep.subr.bf16.mxu0 0
  %821 = vmatpush1.bf16.xpose.msra.mxu0 0
  %822 = vmatprep.subr.bf16.mxu0 0
  %823 = vmatpush1.bf16.xpose.msra.mxu0 0
  %824 = vmatprep.subr.bf16.mxu0 0
  %825 = vmatpush1.bf16.xpose.msra.mxu0 0
  %826 = vmatprep.subr.bf16.mxu0 0
  %827 = vmatpush1.bf16.xpose.msra.mxu0 0
  %828 = vmatprep.subr.bf16.mxu0 0
  %829 = vmatpush1.bf16.xpose.msra.mxu0 %v812
  %830 = vmatprep.subr.bf16.mxu0 0
  %831 = vmatpush2.bf16.xpose.msra.mxu0 0
  %832 = vmatprep.subr.bf16.mxu0 0
  %833 = vmatpush2.bf16.xpose.msra.mxu0 0
  %834 = vmatprep.subr.bf16.mxu0 0
  %835 = vmatpush2.bf16.xpose.msra.mxu0 0
  %836 = vmatprep.subr.bf16.mxu0 0
  %837 = vmatpush2.bf16.xpose.msra.mxu0 0
  %838 = vmatprep.subr.bf16.mxu0 0
  %839 = vmatpush2.bf16.xpose.msra.mxu0 0
  %840 = vmatprep.subr.bf16.mxu0 0
  %841 = vmatpush2.bf16.xpose.msra.mxu0 0
  %842 = vmatprep.subr.bf16.mxu0 0
  %843 = vmatpush2.bf16.xpose.msra.mxu0 0
  %844 = vmatprep.subr.bf16.mxu0 0
  %845 = vmatpush2.bf16.xpose.msra.mxu0 0
  %846 = vmatprep.mubr.bf16.mxu0 0
  %847 = vmatmul.mubr.bf16.gmra.mxu0 %v809
  %v848 = vpop.f32.mrf.mxu0
  %v849 = vadd.f32 0.0, %v848
  %v850 = vpop.f32.mrf.mxu0
  %v851 = vpop.f32.mrf.mxu0
  %v852 = vpop.f32.mrf.mxu0
  %853 = vdwg.mxu0
  %vm854 = vcmask 64512
  %v855 = vsel %vm854, %v435, -inf
  %856 = vmax.xlane.f32.xlu0 %v855
  %v857 = vpop.xlane.xlu0 %856
  %v858 = vsel %vm854, %v481, -inf
  %859 = vmax.xlane.f32.xlu0 %v858
  %v860 = vpop.xlane.xlu0 %859
  %v861 = vsel %vm854, %v527, -inf
  %862 = vmax.xlane.f32.xlu0 %v861
  %v863 = vpop.xlane.xlu0 %862
  %v864 = vsel %vm854, %v573, -inf
  %865 = vmax.xlane.f32.xlu0 %v864
  %v866 = vpop.xlane.xlu0 %865
  %v867 = vsel %vm854, %v619, -inf
  %868 = vmax.xlane.f32.xlu0 %v867
  %v869 = vpop.xlane.xlu0 %868
  %v870 = vsel %vm854, %v665, -inf
  %871 = vmax.xlane.f32.xlu0 %v870
  %v872 = vpop.xlane.xlu0 %871
  %v873 = vsel %vm854, %v711, -inf
  %874 = vmax.xlane.f32.xlu0 %v873
  %v875 = vpop.xlane.xlu0 %874
  %v876 = vsel %vm854, %v757, -inf
  %877 = vmax.xlane.f32.xlu0 %v876
  %v878 = vpop.xlane.xlu0 %877
  %v879 = vsel %vm854, %v803, -inf
  %880 = vmax.xlane.f32.xlu0 %v879
  %v881 = vpop.xlane.xlu0 %880
  %v882 = vsel %vm854, %v849, -inf
  %883 = vmax.xlane.f32.xlu0 %v882
  %v884 = vpop.xlane.xlu0 %883
  %v885 = vsub.f32 %v435, %v857
  %v886 = vsub.f32 %v481, %v860
  %v887 = vsub.f32 %v527, %v863
  %v888 = vsub.f32 %v573, %v866
  %v889 = vsub.f32 %v619, %v869
  %v890 = vsub.f32 %v665, %v872
  %v891 = vsub.f32 %v711, %v875
  %v892 = vsub.f32 %v757, %v878
  %v893 = vsub.f32 %v803, %v881
  %v894 = vsub.f32 %v849, %v884
  %v895 = vmul.f32 %v885, 1.442695
  %v896 = vpow.pop %v895
  %v897 = vmul.f32 %v886, 1.442695
  %v898 = vpow.pop %v897
  %v899 = vmul.f32 %v887, 1.442695
  %v900 = vpow.pop %v899
  %v901 = vmul.f32 %v888, 1.442695
  %v902 = vpow.pop %v901
  %v903 = vmul.f32 %v889, 1.442695
  %v904 = vpow.pop %v903
  %v905 = vmul.f32 %v890, 1.442695
  %v906 = vpow.pop %v905
  %v907 = vmul.f32 %v891, 1.442695
  %v908 = vpow.pop %v907
  %v909 = vmul.f32 %v892, 1.442695
  %v910 = vpow.pop %v909
  %v911 = vmul.f32 %v893, 1.442695
  %v912 = vpow.pop %v911
  %v913 = vmul.f32 %v894, 1.442695
  %v914 = vpow.pop %v913
  %v915 = vsel %vm854, %v896, 0.0
  %916 = vadd.xlane.f32.xlu0 %v915
  %v917 = vpop.xlane.xlu0 %916
  %v918 = vsel %vm854, %v898, 0.0
  %919 = vadd.xlane.f32.xlu0 %v918
  %v920 = vpop.xlane.xlu0 %919
  %v921 = vsel %vm854, %v900, 0.0
  %922 = vadd.xlane.f32.xlu0 %v921
  %v923 = vpop.xlane.xlu0 %922
  %v924 = vsel %vm854, %v902, 0.0
  %925 = vadd.xlane.f32.xlu0 %v924
  %v926 = vpop.xlane.xlu0 %925
  %v927 = vsel %vm854, %v904, 0.0
  %928 = vadd.xlane.f32.xlu0 %v927
  %v929 = vpop.xlane.xlu0 %928
  %v930 = vsel %vm854, %v906, 0.0
  %931 = vadd.xlane.f32.xlu0 %v930
  %v932 = vpop.xlane.xlu0 %931
  %v933 = vsel %vm854, %v908, 0.0
  %934 = vadd.xlane.f32.xlu0 %v933
  %v935 = vpop.xlane.xlu0 %934
  %v936 = vsel %vm854, %v910, 0.0
  %937 = vadd.xlane.f32.xlu0 %v936
  %v938 = vpop.xlane.xlu0 %937
  %v939 = vsel %vm854, %v912, 0.0
  %940 = vadd.xlane.f32.xlu0 %v939
  %v941 = vpop.xlane.xlu0 %940
  %v942 = vsel %vm854, %v914, 0.0
  %943 = vadd.xlane.f32.xlu0 %v942
  %v944 = vpop.xlane.xlu0 %943
  %v945 = vrcp.pop %v917
  %v946 = vrcp.pop %v920
  %v947 = vrcp.pop %v923
  %v948 = vrcp.pop %v926
  %v949 = vrcp.pop %v929
  %v950 = vrcp.pop %v932
  %v951 = vrcp.pop %v935
  %v952 = vrcp.pop %v938
  %v953 = vrcp.pop %v941
  %v954 = vrcp.pop %v944
  %v955 = vmul.f32 %v896, %v945
  %v956 = vmul.f32 %v898, %v946
  %v957 = vmul.f32 %v900, %v947
  %v958 = vmul.f32 %v902, %v948
  %v959 = vmul.f32 %v904, %v949
  %v960 = vmul.f32 %v906, %v950
  %v961 = vmul.f32 %v908, %v951
  %v962 = vmul.f32 %v910, %v952
  %v963 = vmul.f32 %v912, %v953
  %v964 = vmul.f32 %v914, %v954
  %v965 = vpack.c.bf16 %v955, %v955
  %v966 = vpack.c.bf16 %v956, %v956
  %v967 = vpack.c.bf16 %v957, %v957
  %v968 = vpack.c.bf16 %v958, %v958
  %v969 = vpack.c.bf16 %v959, %v959
  %v970 = vpack.c.bf16 %v960, %v960
  %v971 = vpack.c.bf16 %v961, %v961
  %v972 = vpack.c.bf16 %v962, %v962
  %v973 = vpack.c.bf16 %v963, %v963
  %v974 = vpack.c.bf16 %v964, %v964
  %v975 = vpack.c.bf16 %v336, %v336
  %v976 = vpack.c.bf16 %v339, %v339
  %v977 = vpack.c.bf16 %v344, %v344
  %v978 = vpack.c.bf16 %v347, %v347
  %v979 = vpack.c.bf16 %v352, %v352
  %v980 = vpack.c.bf16 %v355, %v355
  %v981 = vpack.c.bf16 %v360, %v360
  %v982 = vpack.c.bf16 %v363, %v363
  %v983 = vpack.c.bf16 %v368, %v368
  %v984 = vpack.c.bf16 %v371, %v371
  %v986 = vsel %vm854, %v965, 0
  %vm988 = vcmask 1043456
  %v990 = vsel %vm988, %v975, 0
  %992 = vmatprep.subr.bf16.mxu0 0
  %993 = vmatpush1.bf16.msra.mxu0 0
  %994 = vmatprep.subr.bf16.mxu0 0
  %995 = vmatpush1.bf16.msra.mxu0 0
  %996 = vmatprep.subr.bf16.mxu0 0
  %997 = vmatpush1.bf16.msra.mxu0 0
  %998 = vmatprep.subr.bf16.mxu0 0
  %999 = vmatpush1.bf16.msra.mxu0 0
  %1000 = vmatprep.subr.bf16.mxu0 0
  %1001 = vmatpush1.bf16.msra.mxu0 0
  %1002 = vmatprep.subr.bf16.mxu0 0
  %1003 = vmatpush1.bf16.msra.mxu0 0
  %1004 = vmatprep.subr.bf16.mxu0 0
  %1005 = vmatpush1.bf16.msra.mxu0 0
  %1006 = vmatprep.subr.bf16.mxu0 0
  %1007 = vmatpush1.bf16.msra.mxu0 %v990
  %1008 = vmatprep.subr.bf16.mxu0 0
  %1009 = vmatpush2.bf16.msra.mxu0 0
  %1010 = vmatprep.subr.bf16.mxu0 0
  %1011 = vmatpush2.bf16.msra.mxu0 0
  %1012 = vmatprep.subr.bf16.mxu0 0
  %1013 = vmatpush2.bf16.msra.mxu0 0
  %1014 = vmatprep.subr.bf16.mxu0 0
  %1015 = vmatpush2.bf16.msra.mxu0 0
  %1016 = vmatprep.subr.bf16.mxu0 0
  %1017 = vmatpush2.bf16.msra.mxu0 0
  %1018 = vmatprep.subr.bf16.mxu0 0
  %1019 = vmatpush2.bf16.msra.mxu0 0
  %1020 = vmatprep.subr.bf16.mxu0 0
  %1021 = vmatpush2.bf16.msra.mxu0 0
  %1022 = vmatprep.subr.bf16.mxu0 0
  %1023 = vmatpush2.bf16.msra.mxu0 0
  %1024 = vmatprep.mubr.bf16.mxu0 0
  %1025 = vmatmul.mubr.bf16.gmra.mxu0 %v986
  %v1026 = vpop.f32.mrf.mxu0
  %v1027 = vadd.f32 0.0, %v1026
  %v1028 = vpop.f32.mrf.mxu0
  %v1029 = vpop.f32.mrf.mxu0
  %v1030 = vpop.f32.mrf.mxu0
  %1031 = vdwg.mxu0
  %v1033 = vsel %vm854, %v966, 0
  %v1036 = vsel %vm988, %v976, 0
  %1038 = vmatprep.subr.bf16.mxu0 0
  %1039 = vmatpush1.bf16.msra.mxu0 0
  %1040 = vmatprep.subr.bf16.mxu0 0
  %1041 = vmatpush1.bf16.msra.mxu0 0
  %1042 = vmatprep.subr.bf16.mxu0 0
  %1043 = vmatpush1.bf16.msra.mxu0 0
  %1044 = vmatprep.subr.bf16.mxu0 0
  %1045 = vmatpush1.bf16.msra.mxu0 0
  %1046 = vmatprep.subr.bf16.mxu0 0
  %1047 = vmatpush1.bf16.msra.mxu0 0
  %1048 = vmatprep.subr.bf16.mxu0 0
  %1049 = vmatpush1.bf16.msra.mxu0 0
  %1050 = vmatprep.subr.bf16.mxu0 0
  %1051 = vmatpush1.bf16.msra.mxu0 0
  %1052 = vmatprep.subr.bf16.mxu0 0
  %1053 = vmatpush1.bf16.msra.mxu0 %v1036
  %1054 = vmatprep.subr.bf16.mxu0 0
  %1055 = vmatpush2.bf16.msra.mxu0 0
  %1056 = vmatprep.subr.bf16.mxu0 0
  %1057 = vmatpush2.bf16.msra.mxu0 0
  %1058 = vmatprep.subr.bf16.mxu0 0
  %1059 = vmatpush2.bf16.msra.mxu0 0
  %1060 = vmatprep.subr.bf16.mxu0 0
  %1061 = vmatpush2.bf16.msra.mxu0 0
  %1062 = vmatprep.subr.bf16.mxu0 0
  %1063 = vmatpush2.bf16.msra.mxu0 0
  %1064 = vmatprep.subr.bf16.mxu0 0
  %1065 = vmatpush2.bf16.msra.mxu0 0
  %1066 = vmatprep.subr.bf16.mxu0 0
  %1067 = vmatpush2.bf16.msra.mxu0 0
  %1068 = vmatprep.subr.bf16.mxu0 0
  %1069 = vmatpush2.bf16.msra.mxu0 0
  %1070 = vmatprep.mubr.bf16.mxu0 0
  %1071 = vmatmul.mubr.bf16.gmra.mxu0 %v1033
  %v1072 = vpop.f32.mrf.mxu0
  %v1073 = vadd.f32 0.0, %v1072
  %v1074 = vpop.f32.mrf.mxu0
  %v1075 = vpop.f32.mrf.mxu0
  %v1076 = vpop.f32.mrf.mxu0
  %1077 = vdwg.mxu0
  %v1079 = vsel %vm854, %v967, 0
  %v1082 = vsel %vm988, %v977, 0
  %1084 = vmatprep.subr.bf16.mxu0 0
  %1085 = vmatpush1.bf16.msra.mxu0 0
  %1086 = vmatprep.subr.bf16.mxu0 0
  %1087 = vmatpush1.bf16.msra.mxu0 0
  %1088 = vmatprep.subr.bf16.mxu0 0
  %1089 = vmatpush1.bf16.msra.mxu0 0
  %1090 = vmatprep.subr.bf16.mxu0 0
  %1091 = vmatpush1.bf16.msra.mxu0 0
  %1092 = vmatprep.subr.bf16.mxu0 0
  %1093 = vmatpush1.bf16.msra.mxu0 0
  %1094 = vmatprep.subr.bf16.mxu0 0
  %1095 = vmatpush1.bf16.msra.mxu0 0
  %1096 = vmatprep.subr.bf16.mxu0 0
  %1097 = vmatpush1.bf16.msra.mxu0 0
  %1098 = vmatprep.subr.bf16.mxu0 0
  %1099 = vmatpush1.bf16.msra.mxu0 %v1082
  %1100 = vmatprep.subr.bf16.mxu0 0
  %1101 = vmatpush2.bf16.msra.mxu0 0
  %1102 = vmatprep.subr.bf16.mxu0 0
  %1103 = vmatpush2.bf16.msra.mxu0 0
  %1104 = vmatprep.subr.bf16.mxu0 0
  %1105 = vmatpush2.bf16.msra.mxu0 0
  %1106 = vmatprep.subr.bf16.mxu0 0
  %1107 = vmatpush2.bf16.msra.mxu0 0
  %1108 = vmatprep.subr.bf16.mxu0 0
  %1109 = vmatpush2.bf16.msra.mxu0 0
  %1110 = vmatprep.subr.bf16.mxu0 0
  %1111 = vmatpush2.bf16.msra.mxu0 0
  %1112 = vmatprep.subr.bf16.mxu0 0
  %1113 = vmatpush2.bf16.msra.mxu0 0
  %1114 = vmatprep.subr.bf16.mxu0 0
  %1115 = vmatpush2.bf16.msra.mxu0 0
  %1116 = vmatprep.mubr.bf16.mxu0 0
  %1117 = vmatmul.mubr.bf16.gmra.mxu0 %v1079
  %v1118 = vpop.f32.mrf.mxu0
  %v1119 = vadd.f32 0.0, %v1118
  %v1120 = vpop.f32.mrf.mxu0
  %v1121 = vpop.f32.mrf.mxu0
  %v1122 = vpop.f32.mrf.mxu0
  %1123 = vdwg.mxu0
  %v1125 = vsel %vm854, %v968, 0
  %v1128 = vsel %vm988, %v978, 0
  %1130 = vmatprep.subr.bf16.mxu0 0
  %1131 = vmatpush1.bf16.msra.mxu0 0
  %1132 = vmatprep.subr.bf16.mxu0 0
  %1133 = vmatpush1.bf16.msra.mxu0 0
  %1134 = vmatprep.subr.bf16.mxu0 0
  %1135 = vmatpush1.bf16.msra.mxu0 0
  %1136 = vmatprep.subr.bf16.mxu0 0
  %1137 = vmatpush1.bf16.msra.mxu0 0
  %1138 = vmatprep.subr.bf16.mxu0 0
  %1139 = vmatpush1.bf16.msra.mxu0 0
  %1140 = vmatprep.subr.bf16.mxu0 0
  %1141 = vmatpush1.bf16.msra.mxu0 0
  %1142 = vmatprep.subr.bf16.mxu0 0
  %1143 = vmatpush1.bf16.msra.mxu0 0
  %1144 = vmatprep.subr.bf16.mxu0 0
  %1145 = vmatpush1.bf16.msra.mxu0 %v1128
  %1146 = vmatprep.subr.bf16.mxu0 0
  %1147 = vmatpush2.bf16.msra.mxu0 0
  %1148 = vmatprep.subr.bf16.mxu0 0
  %1149 = vmatpush2.bf16.msra.mxu0 0
  %1150 = vmatprep.subr.bf16.mxu0 0
  %1151 = vmatpush2.bf16.msra.mxu0 0
  %1152 = vmatprep.subr.bf16.mxu0 0
  %1153 = vmatpush2.bf16.msra.mxu0 0
  %1154 = vmatprep.subr.bf16.mxu0 0
  %1155 = vmatpush2.bf16.msra.mxu0 0
  %1156 = vmatprep.subr.bf16.mxu0 0
  %1157 = vmatpush2.bf16.msra.mxu0 0
  %1158 = vmatprep.subr.bf16.mxu0 0
  %1159 = vmatpush2.bf16.msra.mxu0 0
  %1160 = vmatprep.subr.bf16.mxu0 0
  %1161 = vmatpush2.bf16.msra.mxu0 0
  %1162 = vmatprep.mubr.bf16.mxu0 0
  %1163 = vmatmul.mubr.bf16.gmra.mxu0 %v1125
  %v1164 = vpop.f32.mrf.mxu0
  %v1165 = vadd.f32 0.0, %v1164
  %v1166 = vpop.f32.mrf.mxu0
  %v1167 = vpop.f32.mrf.mxu0
  %v1168 = vpop.f32.mrf.mxu0
  %1169 = vdwg.mxu0
  %v1171 = vsel %vm854, %v969, 0
  %v1174 = vsel %vm988, %v979, 0
  %1176 = vmatprep.subr.bf16.mxu0 0
  %1177 = vmatpush1.bf16.msra.mxu0 0
  %1178 = vmatprep.subr.bf16.mxu0 0
  %1179 = vmatpush1.bf16.msra.mxu0 0
  %1180 = vmatprep.subr.bf16.mxu0 0
  %1181 = vmatpush1.bf16.msra.mxu0 0
  %1182 = vmatprep.subr.bf16.mxu0 0
  %1183 = vmatpush1.bf16.msra.mxu0 0
  %1184 = vmatprep.subr.bf16.mxu0 0
  %1185 = vmatpush1.bf16.msra.mxu0 0
  %1186 = vmatprep.subr.bf16.mxu0 0
  %1187 = vmatpush1.bf16.msra.mxu0 0
  %1188 = vmatprep.subr.bf16.mxu0 0
  %1189 = vmatpush1.bf16.msra.mxu0 0
  %1190 = vmatprep.subr.bf16.mxu0 0
  %1191 = vmatpush1.bf16.msra.mxu0 %v1174
  %1192 = vmatprep.subr.bf16.mxu0 0
  %1193 = vmatpush2.bf16.msra.mxu0 0
  %1194 = vmatprep.subr.bf16.mxu0 0
  %1195 = vmatpush2.bf16.msra.mxu0 0
  %1196 = vmatprep.subr.bf16.mxu0 0
  %1197 = vmatpush2.bf16.msra.mxu0 0
  %1198 = vmatprep.subr.bf16.mxu0 0
  %1199 = vmatpush2.bf16.msra.mxu0 0
  %1200 = vmatprep.subr.bf16.mxu0 0
  %1201 = vmatpush2.bf16.msra.mxu0 0
  %1202 = vmatprep.subr.bf16.mxu0 0
  %1203 = vmatpush2.bf16.msra.mxu0 0
  %1204 = vmatprep.subr.bf16.mxu0 0
  %1205 = vmatpush2.bf16.msra.mxu0 0
  %1206 = vmatprep.subr.bf16.mxu0 0
  %1207 = vmatpush2.bf16.msra.mxu0 0
  %1208 = vmatprep.mubr.bf16.mxu0 0
  %1209 = vmatmul.mubr.bf16.gmra.mxu0 %v1171
  %v1210 = vpop.f32.mrf.mxu0
  %v1211 = vadd.f32 0.0, %v1210
  %v1212 = vpop.f32.mrf.mxu0
  %v1213 = vpop.f32.mrf.mxu0
  %v1214 = vpop.f32.mrf.mxu0
  %1215 = vdwg.mxu0
  %v1217 = vsel %vm854, %v970, 0
  %v1220 = vsel %vm988, %v980, 0
  %1222 = vmatprep.subr.bf16.mxu0 0
  %1223 = vmatpush1.bf16.msra.mxu0 0
  %1224 = vmatprep.subr.bf16.mxu0 0
  %1225 = vmatpush1.bf16.msra.mxu0 0
  %1226 = vmatprep.subr.bf16.mxu0 0
  %1227 = vmatpush1.bf16.msra.mxu0 0
  %1228 = vmatprep.subr.bf16.mxu0 0
  %1229 = vmatpush1.bf16.msra.mxu0 0
  %1230 = vmatprep.subr.bf16.mxu0 0
  %1231 = vmatpush1.bf16.msra.mxu0 0
  %1232 = vmatprep.subr.bf16.mxu0 0
  %1233 = vmatpush1.bf16.msra.mxu0 0
  %1234 = vmatprep.subr.bf16.mxu0 0
  %1235 = vmatpush1.bf16.msra.mxu0 0
  %1236 = vmatprep.subr.bf16.mxu0 0
  %1237 = vmatpush1.bf16.msra.mxu0 %v1220
  %1238 = vmatprep.subr.bf16.mxu0 0
  %1239 = vmatpush2.bf16.msra.mxu0 0
  %1240 = vmatprep.subr.bf16.mxu0 0
  %1241 = vmatpush2.bf16.msra.mxu0 0
  %1242 = vmatprep.subr.bf16.mxu0 0
  %1243 = vmatpush2.bf16.msra.mxu0 0
  %1244 = vmatprep.subr.bf16.mxu0 0
  %1245 = vmatpush2.bf16.msra.mxu0 0
  %1246 = vmatprep.subr.bf16.mxu0 0
  %1247 = vmatpush2.bf16.msra.mxu0 0
  %1248 = vmatprep.subr.bf16.mxu0 0
  %1249 = vmatpush2.bf16.msra.mxu0 0
  %1250 = vmatprep.subr.bf16.mxu0 0
  %1251 = vmatpush2.bf16.msra.mxu0 0
  %1252 = vmatprep.subr.bf16.mxu0 0
  %1253 = vmatpush2.bf16.msra.mxu0 0
  %1254 = vmatprep.mubr.bf16.mxu0 0
  %1255 = vmatmul.mubr.bf16.gmra.mxu0 %v1217
  %v1256 = vpop.f32.mrf.mxu0
  %v1257 = vadd.f32 0.0, %v1256
  %v1258 = vpop.f32.mrf.mxu0
  %v1259 = vpop.f32.mrf.mxu0
  %v1260 = vpop.f32.mrf.mxu0
  %1261 = vdwg.mxu0
  %v1263 = vsel %vm854, %v971, 0
  %v1266 = vsel %vm988, %v981, 0
  %1268 = vmatprep.subr.bf16.mxu0 0
  %1269 = vmatpush1.bf16.msra.mxu0 0
  %1270 = vmatprep.subr.bf16.mxu0 0
  %1271 = vmatpush1.bf16.msra.mxu0 0
  %1272 = vmatprep.subr.bf16.mxu0 0
  %1273 = vmatpush1.bf16.msra.mxu0 0
  %1274 = vmatprep.subr.bf16.mxu0 0
  %1275 = vmatpush1.bf16.msra.mxu0 0
  %1276 = vmatprep.subr.bf16.mxu0 0
  %1277 = vmatpush1.bf16.msra.mxu0 0
  %1278 = vmatprep.subr.bf16.mxu0 0
  %1279 = vmatpush1.bf16.msra.mxu0 0
  %1280 = vmatprep.subr.bf16.mxu0 0
  %1281 = vmatpush1.bf16.msra.mxu0 0
  %1282 = vmatprep.subr.bf16.mxu0 0
  %1283 = vmatpush1.bf16.msra.mxu0 %v1266
  %1284 = vmatprep.subr.bf16.mxu0 0
  %1285 = vmatpush2.bf16.msra.mxu0 0
  %1286 = vmatprep.subr.bf16.mxu0 0
  %1287 = vmatpush2.bf16.msra.mxu0 0
  %1288 = vmatprep.subr.bf16.mxu0 0
  %1289 = vmatpush2.bf16.msra.mxu0 0
  %1290 = vmatprep.subr.bf16.mxu0 0
  %1291 = vmatpush2.bf16.msra.mxu0 0
  %1292 = vmatprep.subr.bf16.mxu0 0
  %1293 = vmatpush2.bf16.msra.mxu0 0
  %1294 = vmatprep.subr.bf16.mxu0 0
  %1295 = vmatpush2.bf16.msra.mxu0 0
  %1296 = vmatprep.subr.bf16.mxu0 0
  %1297 = vmatpush2.bf16.msra.mxu0 0
  %1298 = vmatprep.subr.bf16.mxu0 0
  %1299 = vmatpush2.bf16.msra.mxu0 0
  %1300 = vmatprep.mubr.bf16.mxu0 0
  %1301 = vmatmul.mubr.bf16.gmra.mxu0 %v1263
  %v1302 = vpop.f32.mrf.mxu0
  %v1303 = vadd.f32 0.0, %v1302
  %v1304 = vpop.f32.mrf.mxu0
  %v1305 = vpop.f32.mrf.mxu0
  %v1306 = vpop.f32.mrf.mxu0
  %1307 = vdwg.mxu0
  %v1309 = vsel %vm854, %v972, 0
  %v1312 = vsel %vm988, %v982, 0
  %1314 = vmatprep.subr.bf16.mxu0 0
  %1315 = vmatpush1.bf16.msra.mxu0 0
  %1316 = vmatprep.subr.bf16.mxu0 0
  %1317 = vmatpush1.bf16.msra.mxu0 0
  %1318 = vmatprep.subr.bf16.mxu0 0
  %1319 = vmatpush1.bf16.msra.mxu0 0
  %1320 = vmatprep.subr.bf16.mxu0 0
  %1321 = vmatpush1.bf16.msra.mxu0 0
  %1322 = vmatprep.subr.bf16.mxu0 0
  %1323 = vmatpush1.bf16.msra.mxu0 0
  %1324 = vmatprep.subr.bf16.mxu0 0
  %1325 = vmatpush1.bf16.msra.mxu0 0
  %1326 = vmatprep.subr.bf16.mxu0 0
  %1327 = vmatpush1.bf16.msra.mxu0 0
  %1328 = vmatprep.subr.bf16.mxu0 0
  %1329 = vmatpush1.bf16.msra.mxu0 %v1312
  %1330 = vmatprep.subr.bf16.mxu0 0
  %1331 = vmatpush2.bf16.msra.mxu0 0
  %1332 = vmatprep.subr.bf16.mxu0 0
  %1333 = vmatpush2.bf16.msra.mxu0 0
  %1334 = vmatprep.subr.bf16.mxu0 0
  %1335 = vmatpush2.bf16.msra.mxu0 0
  %1336 = vmatprep.subr.bf16.mxu0 0
  %1337 = vmatpush2.bf16.msra.mxu0 0
  %1338 = vmatprep.subr.bf16.mxu0 0
  %1339 = vmatpush2.bf16.msra.mxu0 0
  %1340 = vmatprep.subr.bf16.mxu0 0
  %1341 = vmatpush2.bf16.msra.mxu0 0
  %1342 = vmatprep.subr.bf16.mxu0 0
  %1343 = vmatpush2.bf16.msra.mxu0 0
  %1344 = vmatprep.subr.bf16.mxu0 0
  %1345 = vmatpush2.bf16.msra.mxu0 0
  %1346 = vmatprep.mubr.bf16.mxu0 0
  %1347 = vmatmul.mubr.bf16.gmra.mxu0 %v1309
  %v1348 = vpop.f32.mrf.mxu0
  %v1349 = vadd.f32 0.0, %v1348
  %v1350 = vpop.f32.mrf.mxu0
  %v1351 = vpop.f32.mrf.mxu0
  %v1352 = vpop.f32.mrf.mxu0
  %1353 = vdwg.mxu0
  %v1355 = vsel %vm854, %v973, 0
  %v1358 = vsel %vm988, %v983, 0
  %1360 = vmatprep.subr.bf16.mxu0 0
  %1361 = vmatpush1.bf16.msra.mxu0 0
  %1362 = vmatprep.subr.bf16.mxu0 0
  %1363 = vmatpush1.bf16.msra.mxu0 0
  %1364 = vmatprep.subr.bf16.mxu0 0
  %1365 = vmatpush1.bf16.msra.mxu0 0
  %1366 = vmatprep.subr.bf16.mxu0 0
  %1367 = vmatpush1.bf16.msra.mxu0 0
  %1368 = vmatprep.subr.bf16.mxu0 0
  %1369 = vmatpush1.bf16.msra.mxu0 0
  %1370 = vmatprep.subr.bf16.mxu0 0
  %1371 = vmatpush1.bf16.msra.mxu0 0
  %1372 = vmatprep.subr.bf16.mxu0 0
  %1373 = vmatpush1.bf16.msra.mxu0 0
  %1374 = vmatprep.subr.bf16.mxu0 0
  %1375 = vmatpush1.bf16.msra.mxu0 %v1358
  %1376 = vmatprep.subr.bf16.mxu0 0
  %1377 = vmatpush2.bf16.msra.mxu0 0
  %1378 = vmatprep.subr.bf16.mxu0 0
  %1379 = vmatpush2.bf16.msra.mxu0 0
  %1380 = vmatprep.subr.bf16.mxu0 0
  %1381 = vmatpush2.bf16.msra.mxu0 0
  %1382 = vmatprep.subr.bf16.mxu0 0
  %1383 = vmatpush2.bf16.msra.mxu0 0
  %1384 = vmatprep.subr.bf16.mxu0 0
  %1385 = vmatpush2.bf16.msra.mxu0 0
  %1386 = vmatprep.subr.bf16.mxu0 0
  %1387 = vmatpush2.bf16.msra.mxu0 0
  %1388 = vmatprep.subr.bf16.mxu0 0
  %1389 = vmatpush2.bf16.msra.mxu0 0
  %1390 = vmatprep.subr.bf16.mxu0 0
  %1391 = vmatpush2.bf16.msra.mxu0 0
  %1392 = vmatprep.mubr.bf16.mxu0 0
  %1393 = vmatmul.mubr.bf16.gmra.mxu0 %v1355
  %v1394 = vpop.f32.mrf.mxu0
  %v1395 = vadd.f32 0.0, %v1394
  %v1396 = vpop.f32.mrf.mxu0
  %v1397 = vpop.f32.mrf.mxu0
  %v1398 = vpop.f32.mrf.mxu0
  %1399 = vdwg.mxu0
  %v1401 = vsel %vm854, %v974, 0
  %v1404 = vsel %vm988, %v984, 0
  %1406 = vmatprep.subr.bf16.mxu0 0
  %1407 = vmatpush1.bf16.msra.mxu0 0
  %1408 = vmatprep.subr.bf16.mxu0 0
  %1409 = vmatpush1.bf16.msra.mxu0 0
  %1410 = vmatprep.subr.bf16.mxu0 0
  %1411 = vmatpush1.bf16.msra.mxu0 0
  %1412 = vmatprep.subr.bf16.mxu0 0
  %1413 = vmatpush1.bf16.msra.mxu0 0
  %1414 = vmatprep.subr.bf16.mxu0 0
  %1415 = vmatpush1.bf16.msra.mxu0 0
  %1416 = vmatprep.subr.bf16.mxu0 0
  %1417 = vmatpush1.bf16.msra.mxu0 0
  %1418 = vmatprep.subr.bf16.mxu0 0
  %1419 = vmatpush1.bf16.msra.mxu0 0
  %1420 = vmatprep.subr.bf16.mxu0 0
  %1421 = vmatpush1.bf16.msra.mxu0 %v1404
  %1422 = vmatprep.subr.bf16.mxu0 0
  %1423 = vmatpush2.bf16.msra.mxu0 0
  %1424 = vmatprep.subr.bf16.mxu0 0
  %1425 = vmatpush2.bf16.msra.mxu0 0
  %1426 = vmatprep.subr.bf16.mxu0 0
  %1427 = vmatpush2.bf16.msra.mxu0 0
  %1428 = vmatprep.subr.bf16.mxu0 0
  %1429 = vmatpush2.bf16.msra.mxu0 0
  %1430 = vmatprep.subr.bf16.mxu0 0
  %1431 = vmatpush2.bf16.msra.mxu0 0
  %1432 = vmatprep.subr.bf16.mxu0 0
  %1433 = vmatpush2.bf16.msra.mxu0 0
  %1434 = vmatprep.subr.bf16.mxu0 0
  %1435 = vmatpush2.bf16.msra.mxu0 0
  %1436 = vmatprep.subr.bf16.mxu0 0
  %1437 = vmatpush2.bf16.msra.mxu0 0
  %1438 = vmatprep.mubr.bf16.mxu0 0
  %1439 = vmatmul.mubr.bf16.gmra.mxu0 %v1401
  %v1440 = vpop.f32.mrf.mxu0
  %v1441 = vadd.f32 0.0, %v1440
  %v1442 = vpop.f32.mrf.mxu0
  %v1443 = vpop.f32.mrf.mxu0
  %v1444 = vpop.f32.mrf.mxu0
  %1445 = vdwg.mxu0
  %v1446 = vpack.c.bf16 %v1073, %v1027
  %v1447 = vpack.c.bf16 %v1165, %v1119
  %v1448 = vpack.c.bf16 %v1257, %v1211
  %v1449 = vpack.c.bf16 %v1349, %v1303
  %v1450 = vpack.c.bf16 %v1441, %v1395
  %v1451 = vld [vmem:[%s5] sm:$0xf]
  %v1452 = vld [vmem:[%s5 + $0x4] sm:$0xf]
  %v1453 = vld [vmem:[%s5 + $0x8] sm:$0xf]
  %v1454 = vld [vmem:[%s5 + $0xc] sm:$0xf]
  %v1455 = vunpack.c.l.bf16 %v56
  %v1456 = vunpack.c.l.bf16 %v57
  %v1457 = vunpack.c.l.bf16 %v58
  %v1458 = vunpack.c.l.bf16 %v59
  %v1459 = vunpack.c.l.bf16 %v60
  %v1460 = vunpack.c.l.bf16 %v61
  %v1461 = vunpack.c.l.bf16 %v62
  %v1462 = vunpack.c.l.bf16 %v63
  %v1463 = vunpack.c.l.bf16 %v64
  %v1464 = vunpack.c.l.bf16 %v65
  %v1469 = vunpack.c.l.b16 %v1451
  %v1470 = vunpack.c.l.b16 %v1452
  %v1471 = vunpack.c.l.b16 %v1453
  %v1472 = vunpack.c.l.b16 %v1454
  %v1473 = vpack.c.b16 %v1470, %v1469
  %v1474 = vpack.c.b16 %v1472, %v1471
  %v1478 = vsel %vm107, %v1446, 0
  %v1481 = vsel %vm107, %v1447, 0
  %v1484 = vsel %vm107, %v1448, 0
  %v1487 = vsel %vm107, %v1449, 0
  %v1490 = vsel %vm107, %v1450, 0
  %1492 = vmatprep.subr.bf16.mxu0 0
  %1493 = vmatpush1.bf16.msra.mxu0 0
  %1494 = vmatprep.subr.bf16.mxu0 0
  %1495 = vmatpush1.bf16.msra.mxu0 0
  %1496 = vmatprep.subr.bf16.mxu0 0
  %1497 = vmatpush1.bf16.msra.mxu0 0
  %1498 = vmatprep.subr.bf16.mxu0 0
  %1499 = vmatpush1.bf16.msra.mxu0 0
  %1500 = vmatprep.subr.bf16.mxu0 0
  %1501 = vmatpush1.bf16.msra.mxu0 0
  %1502 = vmatprep.subr.bf16.mxu0 0
  %1503 = vmatpush1.bf16.msra.mxu0 0
  %1504 = vmatprep.subr.bf16.mxu0 0
  %1505 = vmatpush1.bf16.msra.mxu0 %v1474
  %1506 = vmatprep.subr.bf16.mxu0 0
  %1507 = vmatpush1.bf16.msra.mxu0 %v1473
  %1508 = vmatprep.subr.bf16.mxu0 0
  %1509 = vmatpush2.bf16.msra.mxu0 0
  %1510 = vmatprep.subr.bf16.mxu0 0
  %1511 = vmatpush2.bf16.msra.mxu0 0
  %1512 = vmatprep.subr.bf16.mxu0 0
  %1513 = vmatpush2.bf16.msra.mxu0 0
  %1514 = vmatprep.subr.bf16.mxu0 0
  %1515 = vmatpush2.bf16.msra.mxu0 0
  %1516 = vmatprep.subr.bf16.mxu0 0
  %1517 = vmatpush2.bf16.msra.mxu0 0
  %1518 = vmatprep.subr.bf16.mxu0 0
  %1519 = vmatpush2.bf16.msra.mxu0 0
  %1520 = vmatprep.subr.bf16.mxu0 0
  %1521 = vmatpush2.bf16.msra.mxu0 0
  %1522 = vmatprep.subr.bf16.mxu0 0
  %1523 = vmatpush2.bf16.msra.mxu0 0
  %1524 = vmatprep.mubr.bf16.mxu0 0
  %1525 = vmatmul.mubr.bf16.gmra.mxu0 %v1478
  %v1526 = vpop.f32.mrf.mxu0
  %v1527 = vadd.f32 %v1455, %v1526
  %v1528 = vpop.f32.mrf.mxu0
  %v1529 = vpop.f32.mrf.mxu0
  %v1530 = vadd.f32 %v1456, %v1529
  %v1531 = vpop.f32.mrf.mxu0
  %1532 = vmatprep.mubr.bf16.mxu0 0
  %1533 = vmatmul.mubr.bf16.gmra.mxu0 %v1481
  %v1534 = vpop.f32.mrf.mxu0
  %v1535 = vadd.f32 %v1457, %v1534
  %v1536 = vpop.f32.mrf.mxu0
  %v1537 = vpop.f32.mrf.mxu0
  %v1538 = vadd.f32 %v1458, %v1537
  %v1539 = vpop.f32.mrf.mxu0
  %1540 = vmatprep.mubr.bf16.mxu0 0
  %1541 = vmatmul.mubr.bf16.gmra.mxu0 %v1484
  %v1542 = vpop.f32.mrf.mxu0
  %v1543 = vadd.f32 %v1459, %v1542
  %v1544 = vpop.f32.mrf.mxu0
  %v1545 = vpop.f32.mrf.mxu0
  %v1546 = vadd.f32 %v1460, %v1545
  %v1547 = vpop.f32.mrf.mxu0
  %1548 = vmatprep.mubr.bf16.mxu0 0
  %1549 = vmatmul.mubr.bf16.gmra.mxu0 %v1487
  %v1550 = vpop.f32.mrf.mxu0
  %v1551 = vadd.f32 %v1461, %v1550
  %v1552 = vpop.f32.mrf.mxu0
  %v1553 = vpop.f32.mrf.mxu0
  %v1554 = vadd.f32 %v1462, %v1553
  %v1555 = vpop.f32.mrf.mxu0
  %1556 = vmatprep.mubr.bf16.mxu0 0
  %1557 = vmatmul.mubr.bf16.gmra.mxu0 %v1490
  %v1558 = vpop.f32.mrf.mxu0
  %v1559 = vadd.f32 %v1463, %v1558
  %v1560 = vpop.f32.mrf.mxu0
  %v1561 = vpop.f32.mrf.mxu0
  %v1562 = vadd.f32 %v1464, %v1561
  %v1563 = vpop.f32.mrf.mxu0
  %1564 = vdwg.mxu0
  %v1565 = vld [vmem:[%s1] sm:$0xf]
  %v1566 = vld [vmem:[%s1 + $0x4] sm:$0xf]
  %v1567 = vld [vmem:[%s1 + $0x8] sm:$0xf]
  %v1568 = vld [vmem:[%s1 + $0xc] sm:$0xf]
  %v1569 = vld [vmem:[%s1 + $0x10] sm:$0xf]
  %v1570 = vld [vmem:[%s1 + $0x14] sm:$0xf]
  %v1571 = vld [vmem:[%s1 + $0x18] sm:$0xf]
  %v1572 = vld [vmem:[%s1 + $0x1c] sm:$0xf]
  %v1573 = vld [vmem:[%s1 + $0x20] sm:$0xf]
  %v1574 = vld [vmem:[%s1 + $0x24] sm:$0xf]
  %v1575 = vld [vmem:[%s6] sm:$0xf]
  %v1576 = vld [vmem:[%s6 + $0x4] sm:$0xf]
  %v1577 = vld [vmem:[%s6 + $0x8] sm:$0xf]
  %v1578 = vld [vmem:[%s6 + $0xc] sm:$0xf]
  %v1579 = vld [vmem:[%s6 + $0x10] sm:$0xf]
  %v1580 = vld [vmem:[%s6 + $0x14] sm:$0xf]
  %v1581 = vld [vmem:[%s7] sm:$0x1]
  %v1583 = vlaneseq
  %v1584 = vshrl.u32 %v1583, 7
  %v1585 = vsub.s32 0, %v1584
  %v1586 = vrot.slane %v1581, %v1585
  %v1598 = vunpack.c.l.b16 %v1565
  %v1599 = vunpack.c.l.b16 %v1566
  %v1600 = vunpack.c.l.b16 %v1567
  %v1601 = vunpack.c.l.b16 %v1568
  %v1602 = vunpack.c.l.b16 %v1569
  %v1603 = vunpack.c.l.b16 %v1570
  %v1604 = vunpack.c.l.b16 %v1571
  %v1605 = vunpack.c.l.b16 %v1572
  %v1606 = vunpack.c.l.b16 %v1573
  %v1607 = vunpack.c.l.b16 %v1574
  %v1608 = vpack.c.b16 %v1599, %v1598
  %v1609 = vpack.c.b16 %v1601, %v1600
  %v1610 = vpack.c.b16 %v1603, %v1602
  %v1611 = vpack.c.b16 %v1605, %v1604
  %v1612 = vpack.c.b16 %v1607, %v1606
  %v1619 = vunpack.c.l.b16 %v1575
  %v1620 = vunpack.c.l.b16 %v1576
  %v1621 = vunpack.c.l.b16 %v1577
  %v1622 = vunpack.c.l.b16 %v1578
  %v1623 = vunpack.c.l.b16 %v1579
  %v1624 = vunpack.c.l.b16 %v1580
  %v1625 = vpack.c.b16 %v1620, %v1619
  %v1626 = vpack.c.b16 %v1622, %v1621
  %v1627 = vpack.c.b16 %v1624, %v1623
  %vm1631 = vcmask 392192
  %v1633 = vsel %vm1631, %v1608, 0
  %v1636 = vsel %vm1631, %v1609, 0
  %v1639 = vsel %vm1631, %v1610, 0
  %v1642 = vsel %vm1631, %v1611, 0
  %v1645 = vsel %vm1631, %v1612, 0
  %1647 = vmatprep.subr.bf16.mxu0 0
  %1648 = vmatpush1.bf16.msra.mxu0 0
  %1649 = vmatprep.subr.bf16.mxu0 0
  %1650 = vmatpush1.bf16.msra.mxu0 0
  %1651 = vmatprep.subr.bf16.mxu0 0
  %1652 = vmatpush1.bf16.msra.mxu0 0
  %1653 = vmatprep.subr.bf16.mxu0 0
  %1654 = vmatpush1.bf16.msra.mxu0 0
  %1655 = vmatprep.subr.bf16.mxu0 0
  %1656 = vmatpush1.bf16.msra.mxu0 0
  %1657 = vmatprep.subr.bf16.mxu0 0
  %1658 = vmatpush1.bf16.msra.mxu0 %v1627
  %1659 = vmatprep.subr.bf16.mxu0 0
  %1660 = vmatpush1.bf16.msra.mxu0 %v1626
  %1661 = vmatprep.subr.bf16.mxu0 0
  %1662 = vmatpush1.bf16.msra.mxu0 %v1625
  %1663 = vmatprep.subr.bf16.mxu0 0
  %1664 = vmatpush2.bf16.msra.mxu0 0
  %1665 = vmatprep.subr.bf16.mxu0 0
  %1666 = vmatpush2.bf16.msra.mxu0 0
  %1667 = vmatprep.subr.bf16.mxu0 0
  %1668 = vmatpush2.bf16.msra.mxu0 0
  %1669 = vmatprep.subr.bf16.mxu0 0
  %1670 = vmatpush2.bf16.msra.mxu0 0
  %1671 = vmatprep.subr.bf16.mxu0 0
  %1672 = vmatpush2.bf16.msra.mxu0 0
  %1673 = vmatprep.subr.bf16.mxu0 0
  %1674 = vmatpush2.bf16.msra.mxu0 0
  %1675 = vmatprep.subr.bf16.mxu0 0
  %1676 = vmatpush2.bf16.msra.mxu0 0
  %1677 = vmatprep.subr.bf16.mxu0 0
  %1678 = vmatpush2.bf16.msra.mxu0 0
  %1679 = vmatprep.mubr.bf16.mxu0 0
  %1680 = vmatmul.mubr.bf16.gmra.mxu0 %v1633
  %v1681 = vpop.f32.mrf.mxu0
  %v1682 = vadd.f32 %v1586, %v1681
  %v1683 = vpop.f32.mrf.mxu0
  %v1684 = vpop.f32.mrf.mxu0
  %v1685 = vadd.f32 %v1586, %v1684
  %v1686 = vpop.f32.mrf.mxu0
  %1687 = vmatprep.mubr.bf16.mxu0 0
  %1688 = vmatmul.mubr.bf16.gmra.mxu0 %v1636
  %v1689 = vpop.f32.mrf.mxu0
  %v1690 = vadd.f32 %v1586, %v1689
  %v1691 = vpop.f32.mrf.mxu0
  %v1692 = vpop.f32.mrf.mxu0
  %v1693 = vadd.f32 %v1586, %v1692
  %v1694 = vpop.f32.mrf.mxu0
  %1695 = vmatprep.mubr.bf16.mxu0 0
  %1696 = vmatmul.mubr.bf16.gmra.mxu0 %v1639
  %v1697 = vpop.f32.mrf.mxu0
  %v1698 = vadd.f32 %v1586, %v1697
  %v1699 = vpop.f32.mrf.mxu0
  %v1700 = vpop.f32.mrf.mxu0
  %v1701 = vadd.f32 %v1586, %v1700
  %v1702 = vpop.f32.mrf.mxu0
  %1703 = vmatprep.mubr.bf16.mxu0 0
  %1704 = vmatmul.mubr.bf16.gmra.mxu0 %v1642
  %v1705 = vpop.f32.mrf.mxu0
  %v1706 = vadd.f32 %v1586, %v1705
  %v1707 = vpop.f32.mrf.mxu0
  %v1708 = vpop.f32.mrf.mxu0
  %v1709 = vadd.f32 %v1586, %v1708
  %v1710 = vpop.f32.mrf.mxu0
  %1711 = vmatprep.mubr.bf16.mxu0 0
  %1712 = vmatmul.mubr.bf16.gmra.mxu0 %v1645
  %v1713 = vpop.f32.mrf.mxu0
  %v1714 = vadd.f32 %v1586, %v1713
  %v1715 = vpop.f32.mrf.mxu0
  %v1716 = vpop.f32.mrf.mxu0
  %v1717 = vadd.f32 %v1586, %v1716
  %v1718 = vpop.f32.mrf.mxu0
  %1719 = vdwg.mxu0
  %v1720 = vmax.f32 %v1682, 0.0
  %v1721 = vmax.f32 %v1685, 0.0
  %v1722 = vmax.f32 %v1690, 0.0
  %v1723 = vmax.f32 %v1693, 0.0
  %v1724 = vmax.f32 %v1698, 0.0
  %v1725 = vmax.f32 %v1701, 0.0
  %v1726 = vmax.f32 %v1706, 0.0
  %v1727 = vmax.f32 %v1709, 0.0
  %v1728 = vmax.f32 %v1714, 0.0
  %v1729 = vmax.f32 %v1717, 0.0
  %v1730 = vsel %vm107, %v1720, 0.0
  %v1731 = vrot.slane %v1730, 4
  %v1732 = vadd.f32 %v1730, %v1731
  %v1733 = vrot.slane %v1732, 2
  %v1734 = vadd.f32 %v1732, %v1733
  %v1735 = vrot.slane %v1734, 1
  %v1736 = vadd.f32 %v1734, %v1735
  %v1737 = vsel %vm107, %v1721, 0.0
  %v1738 = vrot.slane %v1737, 4
  %v1739 = vadd.f32 %v1737, %v1738
  %v1740 = vrot.slane %v1739, 2
  %v1741 = vadd.f32 %v1739, %v1740
  %v1742 = vrot.slane %v1741, 1
  %v1743 = vadd.f32 %v1741, %v1742
  %v1744 = vsel %vm107, %v1722, 0.0
  %v1745 = vrot.slane %v1744, 4
  %v1746 = vadd.f32 %v1744, %v1745
  %v1747 = vrot.slane %v1746, 2
  %v1748 = vadd.f32 %v1746, %v1747
  %v1749 = vrot.slane %v1748, 1
  %v1750 = vadd.f32 %v1748, %v1749
  %v1751 = vsel %vm107, %v1723, 0.0
  %v1752 = vrot.slane %v1751, 4
  %v1753 = vadd.f32 %v1751, %v1752
  %v1754 = vrot.slane %v1753, 2
  %v1755 = vadd.f32 %v1753, %v1754
  %v1756 = vrot.slane %v1755, 1
  %v1757 = vadd.f32 %v1755, %v1756
  %v1758 = vsel %vm107, %v1724, 0.0
  %v1759 = vrot.slane %v1758, 4
  %v1760 = vadd.f32 %v1758, %v1759
  %v1761 = vrot.slane %v1760, 2
  %v1762 = vadd.f32 %v1760, %v1761
  %v1763 = vrot.slane %v1762, 1
  %v1764 = vadd.f32 %v1762, %v1763
  %v1765 = vsel %vm107, %v1725, 0.0
  %v1766 = vrot.slane %v1765, 4
  %v1767 = vadd.f32 %v1765, %v1766
  %v1768 = vrot.slane %v1767, 2
  %v1769 = vadd.f32 %v1767, %v1768
  %v1770 = vrot.slane %v1769, 1
  %v1771 = vadd.f32 %v1769, %v1770
  %v1772 = vsel %vm107, %v1726, 0.0
  %v1773 = vrot.slane %v1772, 4
  %v1774 = vadd.f32 %v1772, %v1773
  %v1775 = vrot.slane %v1774, 2
  %v1776 = vadd.f32 %v1774, %v1775
  %v1777 = vrot.slane %v1776, 1
  %v1778 = vadd.f32 %v1776, %v1777
  %v1779 = vsel %vm107, %v1727, 0.0
  %v1780 = vrot.slane %v1779, 4
  %v1781 = vadd.f32 %v1779, %v1780
  %v1782 = vrot.slane %v1781, 2
  %v1783 = vadd.f32 %v1781, %v1782
  %v1784 = vrot.slane %v1783, 1
  %v1785 = vadd.f32 %v1783, %v1784
  %v1786 = vsel %vm107, %v1728, 0.0
  %v1787 = vrot.slane %v1786, 4
  %v1788 = vadd.f32 %v1786, %v1787
  %v1789 = vrot.slane %v1788, 2
  %v1790 = vadd.f32 %v1788, %v1789
  %v1791 = vrot.slane %v1790, 1
  %v1792 = vadd.f32 %v1790, %v1791
  %v1793 = vsel %vm107, %v1729, 0.0
  %v1794 = vrot.slane %v1793, 4
  %v1795 = vadd.f32 %v1793, %v1794
  %v1796 = vrot.slane %v1795, 2
  %v1797 = vadd.f32 %v1795, %v1796
  %v1798 = vrot.slane %v1797, 1
  %v1799 = vadd.f32 %v1797, %v1798
  %v1800 = vrcp.pop 8.0
  %v1801 = vmul.f32 %v1736, %v1800
  %v1802 = vmul.f32 %v1743, %v1800
  %v1803 = vmul.f32 %v1750, %v1800
  %v1804 = vmul.f32 %v1757, %v1800
  %v1805 = vmul.f32 %v1764, %v1800
  %v1806 = vmul.f32 %v1771, %v1800
  %v1807 = vmul.f32 %v1778, %v1800
  %v1808 = vmul.f32 %v1785, %v1800
  %v1809 = vmul.f32 %v1792, %v1800
  %v1810 = vmul.f32 %v1799, %v1800
  %v1811 = vpack.c.bf16 %v1530, %v1527
  %v1812 = vpack.c.bf16 %v1538, %v1535
  %v1813 = vpack.c.bf16 %v1546, %v1543
  %v1814 = vpack.c.bf16 %v1554, %v1551
  %v1815 = vpack.c.bf16 %v1562, %v1559
  %v1816 = vld [vmem:[%s8] sm:$0xf]
  %v1817 = vld [vmem:[%s8 + $0x4] sm:$0xf]
  %v1818 = vld [vmem:[%s8 + $0x8] sm:$0xf]
  %v1819 = vld [vmem:[%s8 + $0xc] sm:$0xf]
  %v1824 = vunpack.c.l.b16 %v1816
  %v1825 = vunpack.c.l.b16 %v1817
  %v1826 = vunpack.c.l.b16 %v1818
  %v1827 = vunpack.c.l.b16 %v1819
  %v1828 = vpack.c.b16 %v1825, %v1824
  %v1829 = vpack.c.b16 %v1827, %v1826
  %v1833 = vsel %vm107, %v1811, 0
  %v1836 = vsel %vm107, %v1812, 0
  %v1839 = vsel %vm107, %v1813, 0
  %v1842 = vsel %vm107, %v1814, 0
  %v1845 = vsel %vm107, %v1815, 0
  %1847 = vmatprep.subr.bf16.mxu0 0
  %1848 = vmatpush1.bf16.msra.mxu0 0
  %1849 = vmatprep.subr.bf16.mxu0 0
  %1850 = vmatpush1.bf16.msra.mxu0 0
  %1851 = vmatprep.subr.bf16.mxu0 0
  %1852 = vmatpush1.bf16.msra.mxu0 0
  %1853 = vmatprep.subr.bf16.mxu0 0
  %1854 = vmatpush1.bf16.msra.mxu0 0
  %1855 = vmatprep.subr.bf16.mxu0 0
  %1856 = vmatpush1.bf16.msra.mxu0 0
  %1857 = vmatprep.subr.bf16.mxu0 0
  %1858 = vmatpush1.bf16.msra.mxu0 0
  %1859 = vmatprep.subr.bf16.mxu0 0
  %1860 = vmatpush1.bf16.msra.mxu0 %v1829
  %1861 = vmatprep.subr.bf16.mxu0 0
  %1862 = vmatpush1.bf16.msra.mxu0 %v1828
  %1863 = vmatprep.subr.bf16.mxu0 0
  %1864 = vmatpush2.bf16.msra.mxu0 0
  %1865 = vmatprep.subr.bf16.mxu0 0
  %1866 = vmatpush2.bf16.msra.mxu0 0
  %1867 = vmatprep.subr.bf16.mxu0 0
  %1868 = vmatpush2.bf16.msra.mxu0 0
  %1869 = vmatprep.subr.bf16.mxu0 0
  %1870 = vmatpush2.bf16.msra.mxu0 0
  %1871 = vmatprep.subr.bf16.mxu0 0
  %1872 = vmatpush2.bf16.msra.mxu0 0
  %1873 = vmatprep.subr.bf16.mxu0 0
  %1874 = vmatpush2.bf16.msra.mxu0 0
  %1875 = vmatprep.subr.bf16.mxu0 0
  %1876 = vmatpush2.bf16.msra.mxu0 0
  %1877 = vmatprep.subr.bf16.mxu0 0
  %1878 = vmatpush2.bf16.msra.mxu0 0
  %1879 = vmatprep.mubr.bf16.mxu0 0
  %1880 = vmatmul.mubr.bf16.gmra.mxu0 %v1833
  %v1881 = vpop.f32.mrf.mxu0
  %v1882 = vadd.f32 0.0, %v1881
  %v1883 = vpop.f32.mrf.mxu0
  %v1884 = vpop.f32.mrf.mxu0
  %v1885 = vadd.f32 0.0, %v1884
  %v1886 = vpop.f32.mrf.mxu0
  %1887 = vmatprep.mubr.bf16.mxu0 0
  %1888 = vmatmul.mubr.bf16.gmra.mxu0 %v1836
  %v1889 = vpop.f32.mrf.mxu0
  %v1890 = vadd.f32 0.0, %v1889
  %v1891 = vpop.f32.mrf.mxu0
  %v1892 = vpop.f32.mrf.mxu0
  %v1893 = vadd.f32 0.0, %v1892
  %v1894 = vpop.f32.mrf.mxu0
  %1895 = vmatprep.mubr.bf16.mxu0 0
  %1896 = vmatmul.mubr.bf16.gmra.mxu0 %v1839
  %v1897 = vpop.f32.mrf.mxu0
  %v1898 = vadd.f32 0.0, %v1897
  %v1899 = vpop.f32.mrf.mxu0
  %v1900 = vpop.f32.mrf.mxu0
  %v1901 = vadd.f32 0.0, %v1900
  %v1902 = vpop.f32.mrf.mxu0
  %1903 = vmatprep.mubr.bf16.mxu0 0
  %1904 = vmatmul.mubr.bf16.gmra.mxu0 %v1842
  %v1905 = vpop.f32.mrf.mxu0
  %v1906 = vadd.f32 0.0, %v1905
  %v1907 = vpop.f32.mrf.mxu0
  %v1908 = vpop.f32.mrf.mxu0
  %v1909 = vadd.f32 0.0, %v1908
  %v1910 = vpop.f32.mrf.mxu0
  %1911 = vmatprep.mubr.bf16.mxu0 0
  %1912 = vmatmul.mubr.bf16.gmra.mxu0 %v1845
  %v1913 = vpop.f32.mrf.mxu0
  %v1914 = vadd.f32 0.0, %v1913
  %v1915 = vpop.f32.mrf.mxu0
  %v1916 = vpop.f32.mrf.mxu0
  %v1917 = vadd.f32 0.0, %v1916
  %v1918 = vpop.f32.mrf.mxu0
  %1919 = vdwg.mxu0
  %v1920 = vmul.f32 %v1882, %v1801
  %v1921 = vmul.f32 %v1885, %v1802
  %v1922 = vmul.f32 %v1890, %v1803
  %v1923 = vmul.f32 %v1893, %v1804
  %v1924 = vmul.f32 %v1898, %v1805
  %v1925 = vmul.f32 %v1901, %v1806
  %v1926 = vmul.f32 %v1906, %v1807
  %v1927 = vmul.f32 %v1909, %v1808
  %v1928 = vmul.f32 %v1914, %v1809
  %v1929 = vmul.f32 %v1917, %v1810
  %v1930 = vsel %vm107, %v1920, 0.0
  %1931 = vadd.xlane.f32.xlu0 %v1930
  %v1932 = vpop.xlane.xlu0 %1931
  %v1933 = vsel %vm107, %v1921, 0.0
  %1934 = vadd.xlane.f32.xlu0 %v1933
  %v1935 = vpop.xlane.xlu0 %1934
  %v1936 = vsel %vm107, %v1922, 0.0
  %1937 = vadd.xlane.f32.xlu0 %v1936
  %v1938 = vpop.xlane.xlu0 %1937
  %v1939 = vsel %vm107, %v1923, 0.0
  %1940 = vadd.xlane.f32.xlu0 %v1939
  %v1941 = vpop.xlane.xlu0 %1940
  %v1942 = vsel %vm107, %v1924, 0.0
  %1943 = vadd.xlane.f32.xlu0 %v1942
  %v1944 = vpop.xlane.xlu0 %1943
  %v1945 = vsel %vm107, %v1925, 0.0
  %1946 = vadd.xlane.f32.xlu0 %v1945
  %v1947 = vpop.xlane.xlu0 %1946
  %v1948 = vsel %vm107, %v1926, 0.0
  %1949 = vadd.xlane.f32.xlu0 %v1948
  %v1950 = vpop.xlane.xlu0 %1949
  %v1951 = vsel %vm107, %v1927, 0.0
  %1952 = vadd.xlane.f32.xlu0 %v1951
  %v1953 = vpop.xlane.xlu0 %1952
  %v1954 = vsel %vm107, %v1928, 0.0
  %1955 = vadd.xlane.f32.xlu0 %v1954
  %v1956 = vpop.xlane.xlu0 %1955
  %v1957 = vsel %vm107, %v1929, 0.0
  %1958 = vadd.xlane.f32.xlu0 %v1957
  %v1959 = vpop.xlane.xlu0 %1958
  %v1970 = vlaneseq
  %v1971 = vand.u32 %v1970, 127
  %v1972 = vlaneseq
  %v1973 = vshrl.u32 %v1972, 7
  %v1974 = vsub.s32 %v1971, %v1973
  %v1975 = vrot.slane %v1932, %v1974
  %v1976 = vlaneseq
  %v1977 = vshrl.u32 %v1976, 7
  %v1978 = vsub.s32 %v1971, %v1977
  %v1979 = vrot.slane %v1935, %v1978
  %v1980 = vlaneseq
  %v1981 = vshrl.u32 %v1980, 7
  %v1982 = vsub.s32 %v1971, %v1981
  %v1983 = vrot.slane %v1938, %v1982
  %v1984 = vlaneseq
  %v1985 = vshrl.u32 %v1984, 7
  %v1986 = vsub.s32 %v1971, %v1985
  %v1987 = vrot.slane %v1941, %v1986
  %v1988 = vlaneseq
  %v1989 = vshrl.u32 %v1988, 7
  %v1990 = vsub.s32 %v1971, %v1989
  %v1991 = vrot.slane %v1944, %v1990
  %v1992 = vlaneseq
  %v1993 = vshrl.u32 %v1992, 7
  %v1994 = vsub.s32 %v1971, %v1993
  %v1995 = vrot.slane %v1947, %v1994
  %v1996 = vlaneseq
  %v1997 = vshrl.u32 %v1996, 7
  %v1998 = vsub.s32 %v1971, %v1997
  %v1999 = vrot.slane %v1950, %v1998
  %v2000 = vlaneseq
  %v2001 = vshrl.u32 %v2000, 7
  %v2002 = vsub.s32 %v1971, %v2001
  %v2003 = vrot.slane %v1953, %v2002
  %v2004 = vlaneseq
  %v2005 = vshrl.u32 %v2004, 7
  %v2006 = vsub.s32 %v1971, %v2005
  %v2007 = vrot.slane %v1956, %v2006
  %v2008 = vlaneseq
  %v2009 = vshrl.u32 %v2008, 7
  %v2010 = vsub.s32 %v1971, %v2009
  %v2011 = vrot.slane %v1959, %v2010
  %vm2012 = vcmask 1041409
  %v2013 = vsel %vm2012, %v1979, %v1975
  %vm2014 = vcmask 1042434
  %v2015 = vsel %vm2014, %v1983, %v2013
  %vm2016 = vcmask 1043459
  %v2017 = vsel %vm2016, %v1987, %v2015
  %vm2018 = vcmask 1044484
  %v2019 = vsel %vm2018, %v1991, %v2017
  %vm2020 = vcmask 1045509
  %v2021 = vsel %vm2020, %v1995, %v2019
  %vm2022 = vcmask 1046534
  %v2023 = vsel %vm2022, %v1999, %v2021
  %vm2024 = vcmask 1047559
  %v2025 = vsel %vm2024, %v2003, %v2023
  %v2026 = vsel %vm2012, %v2011, %v2007
  %v2029 = vsel %vm854, %v2025, -inf
  %2030 = vmax.xlane.f32.xlu0 %v2029
  %v2031 = vpop.xlane.xlu0 %2030
  %vm2032 = vcmask 58368
  %v2033 = vsel %vm2032, %v2026, -inf
  %2034 = vmax.xlane.f32.xlu0 %v2033
  %v2035 = vpop.xlane.xlu0 %2034
  %v2038 = vlaneseq
  %v2039 = vshrl.u32 %v2038, 7
  %v2040 = vsub.s32 0, %v2039
  %v2041 = vrot.slane %v2031, %v2040
  %v2042 = vlaneseq
  %v2043 = vshrl.u32 %v2042, 7
  %v2044 = vsub.s32 1, %v2043
  %v2045 = vrot.slane %v2031, %v2044
  %v2046 = vlaneseq
  %v2047 = vshrl.u32 %v2046, 7
  %v2048 = vsub.s32 2, %v2047
  %v2049 = vrot.slane %v2031, %v2048
  %v2050 = vlaneseq
  %v2051 = vshrl.u32 %v2050, 7
  %v2052 = vsub.s32 3, %v2051
  %v2053 = vrot.slane %v2031, %v2052
  %v2054 = vlaneseq
  %v2055 = vshrl.u32 %v2054, 7
  %v2056 = vsub.s32 4, %v2055
  %v2057 = vrot.slane %v2031, %v2056
  %v2058 = vlaneseq
  %v2059 = vshrl.u32 %v2058, 7
  %v2060 = vsub.s32 5, %v2059
  %v2061 = vrot.slane %v2031, %v2060
  %v2062 = vlaneseq
  %v2063 = vshrl.u32 %v2062, 7
  %v2064 = vsub.s32 6, %v2063
  %v2065 = vrot.slane %v2031, %v2064
  %v2066 = vlaneseq
  %v2067 = vshrl.u32 %v2066, 7
  %v2068 = vsub.s32 7, %v2067
  %v2069 = vrot.slane %v2031, %v2068
  %v2070 = vlaneseq
  %v2071 = vshrl.u32 %v2070, 7
  %v2072 = vsub.s32 0, %v2071
  %v2073 = vrot.slane %v2035, %v2072
  %v2074 = vlaneseq
  %v2075 = vshrl.u32 %v2074, 7
  %v2076 = vsub.s32 1, %v2075
  %v2077 = vrot.slane %v2035, %v2076
  %v2088 = vsub.f32 %v1932, %v2041
  %v2089 = vsub.f32 %v1935, %v2045
  %v2090 = vsub.f32 %v1938, %v2049
  %v2091 = vsub.f32 %v1941, %v2053
  %v2092 = vsub.f32 %v1944, %v2057
  %v2093 = vsub.f32 %v1947, %v2061
  %v2094 = vsub.f32 %v1950, %v2065
  %v2095 = vsub.f32 %v1953, %v2069
  %v2096 = vsub.f32 %v1956, %v2073
  %v2097 = vsub.f32 %v1959, %v2077
  %v2098 = vmul.f32 %v2088, 1.442695
  %v2099 = vpow.pop %v2098
  %v2100 = vmul.f32 %v2089, 1.442695
  %v2101 = vpow.pop %v2100
  %v2102 = vmul.f32 %v2090, 1.442695
  %v2103 = vpow.pop %v2102
  %v2104 = vmul.f32 %v2091, 1.442695
  %v2105 = vpow.pop %v2104
  %v2106 = vmul.f32 %v2092, 1.442695
  %v2107 = vpow.pop %v2106
  %v2108 = vmul.f32 %v2093, 1.442695
  %v2109 = vpow.pop %v2108
  %v2110 = vmul.f32 %v2094, 1.442695
  %v2111 = vpow.pop %v2110
  %v2112 = vmul.f32 %v2095, 1.442695
  %v2113 = vpow.pop %v2112
  %v2114 = vmul.f32 %v2096, 1.442695
  %v2115 = vpow.pop %v2114
  %v2116 = vmul.f32 %v2097, 1.442695
  %v2117 = vpow.pop %v2116
  %2128 = vset.pattern.permute.xlu0 0
  %2129 = vperm.xlu0 %2128, %v2099
  %v2130 = vpop.permute.xlu0 %2129
  %2131 = vset.pattern.permute.xlu0 0
  %2132 = vperm.xlu0 %2131, %v2101
  %v2133 = vpop.permute.xlu0 %2132
  %2134 = vset.pattern.permute.xlu0 0
  %2135 = vperm.xlu0 %2134, %v2103
  %v2136 = vpop.permute.xlu0 %2135
  %2137 = vset.pattern.permute.xlu0 0
  %2138 = vperm.xlu0 %2137, %v2105
  %v2139 = vpop.permute.xlu0 %2138
  %2140 = vset.pattern.permute.xlu0 0
  %2141 = vperm.xlu0 %2140, %v2107
  %v2142 = vpop.permute.xlu0 %2141
  %2143 = vset.pattern.permute.xlu0 0
  %2144 = vperm.xlu0 %2143, %v2109
  %v2145 = vpop.permute.xlu0 %2144
  %2146 = vset.pattern.permute.xlu0 0
  %2147 = vperm.xlu0 %2146, %v2111
  %v2148 = vpop.permute.xlu0 %2147
  %2149 = vset.pattern.permute.xlu0 0
  %2150 = vperm.xlu0 %2149, %v2113
  %v2151 = vpop.permute.xlu0 %2150
  %2152 = vset.pattern.permute.xlu0 0
  %2153 = vperm.xlu0 %2152, %v2115
  %v2154 = vpop.permute.xlu0 %2153
  %2155 = vset.pattern.permute.xlu0 0
  %2156 = vperm.xlu0 %2155, %v2117
  %v2157 = vpop.permute.xlu0 %2156
  %v2158 = vlaneseq
  %v2159 = vshrl.u32 %v2158, 7
  %v2160 = vsub.s32 %v1971, %v2159
  %v2161 = vrot.slane %v2130, %v2160
  %v2162 = vlaneseq
  %v2163 = vshrl.u32 %v2162, 7
  %v2164 = vsub.s32 %v1971, %v2163
  %v2165 = vrot.slane %v2133, %v2164
  %v2166 = vlaneseq
  %v2167 = vshrl.u32 %v2166, 7
  %v2168 = vsub.s32 %v1971, %v2167
  %v2169 = vrot.slane %v2136, %v2168
  %v2170 = vlaneseq
  %v2171 = vshrl.u32 %v2170, 7
  %v2172 = vsub.s32 %v1971, %v2171
  %v2173 = vrot.slane %v2139, %v2172
  %v2174 = vlaneseq
  %v2175 = vshrl.u32 %v2174, 7
  %v2176 = vsub.s32 %v1971, %v2175
  %v2177 = vrot.slane %v2142, %v2176
  %v2178 = vlaneseq
  %v2179 = vshrl.u32 %v2178, 7
  %v2180 = vsub.s32 %v1971, %v2179
  %v2181 = vrot.slane %v2145, %v2180
  %v2182 = vlaneseq
  %v2183 = vshrl.u32 %v2182, 7
  %v2184 = vsub.s32 %v1971, %v2183
  %v2185 = vrot.slane %v2148, %v2184
  %v2186 = vlaneseq
  %v2187 = vshrl.u32 %v2186, 7
  %v2188 = vsub.s32 %v1971, %v2187
  %v2189 = vrot.slane %v2151, %v2188
  %v2190 = vlaneseq
  %v2191 = vshrl.u32 %v2190, 7
  %v2192 = vsub.s32 %v1971, %v2191
  %v2193 = vrot.slane %v2154, %v2192
  %v2194 = vlaneseq
  %v2195 = vshrl.u32 %v2194, 7
  %v2196 = vsub.s32 %v1971, %v2195
  %v2197 = vrot.slane %v2157, %v2196
  %v2198 = vsel %vm2012, %v2165, %v2161
  %v2199 = vsel %vm2014, %v2169, %v2198
  %v2200 = vsel %vm2016, %v2173, %v2199
  %v2201 = vsel %vm2018, %v2177, %v2200
  %v2202 = vsel %vm2020, %v2181, %v2201
  %v2203 = vsel %vm2022, %v2185, %v2202
  %v2204 = vsel %vm2024, %v2189, %v2203
  %v2205 = vsel %vm2012, %v2197, %v2193
  %v2208 = vsel %vm854, %v2204, 0.0
  %2209 = vadd.xlane.f32.xlu0 %v2208
  %v2210 = vpop.xlane.xlu0 %2209
  %v2211 = vsel %vm2032, %v2205, 0.0
  %2212 = vadd.xlane.f32.xlu0 %v2211
  %v2213 = vpop.xlane.xlu0 %2212
  %v2214 = vrcp.pop %v2210
  %v2215 = vrcp.pop %v2213
  %v2218 = vlaneseq
  %v2219 = vshrl.u32 %v2218, 7
  %v2220 = vsub.s32 0, %v2219
  %v2221 = vrot.slane %v2214, %v2220
  %v2222 = vlaneseq
  %v2223 = vshrl.u32 %v2222, 7
  %v2224 = vsub.s32 1, %v2223
  %v2225 = vrot.slane %v2214, %v2224
  %v2226 = vlaneseq
  %v2227 = vshrl.u32 %v2226, 7
  %v2228 = vsub.s32 2, %v2227
  %v2229 = vrot.slane %v2214, %v2228
  %v2230 = vlaneseq
  %v2231 = vshrl.u32 %v2230, 7
  %v2232 = vsub.s32 3, %v2231
  %v2233 = vrot.slane %v2214, %v2232
  %v2234 = vlaneseq
  %v2235 = vshrl.u32 %v2234, 7
  %v2236 = vsub.s32 4, %v2235
  %v2237 = vrot.slane %v2214, %v2236
  %v2238 = vlaneseq
  %v2239 = vshrl.u32 %v2238, 7
  %v2240 = vsub.s32 5, %v2239
  %v2241 = vrot.slane %v2214, %v2240
  %v2242 = vlaneseq
  %v2243 = vshrl.u32 %v2242, 7
  %v2244 = vsub.s32 6, %v2243
  %v2245 = vrot.slane %v2214, %v2244
  %v2246 = vlaneseq
  %v2247 = vshrl.u32 %v2246, 7
  %v2248 = vsub.s32 7, %v2247
  %v2249 = vrot.slane %v2214, %v2248
  %v2250 = vlaneseq
  %v2251 = vshrl.u32 %v2250, 7
  %v2252 = vsub.s32 0, %v2251
  %v2253 = vrot.slane %v2215, %v2252
  %v2254 = vlaneseq
  %v2255 = vshrl.u32 %v2254, 7
  %v2256 = vsub.s32 1, %v2255
  %v2257 = vrot.slane %v2215, %v2256
  %v2268 = vmul.f32 %v2099, %v2221
  %v2269 = vmul.f32 %v2101, %v2225
  %v2270 = vmul.f32 %v2103, %v2229
  %v2271 = vmul.f32 %v2105, %v2233
  %v2272 = vmul.f32 %v2107, %v2237
  %v2273 = vmul.f32 %v2109, %v2241
  %v2274 = vmul.f32 %v2111, %v2245
  %v2275 = vmul.f32 %v2113, %v2249
  %v2276 = vmul.f32 %v2115, %v2253
  %v2277 = vmul.f32 %v2117, %v2257
  %2279 = vset.pattern.permute.xlu0 0
  %2280 = vperm.xlu0 %2279, %v2268
  %v2281 = vpop.permute.xlu0 %2280
  %2284 = vset.pattern.permute.xlu0 0
  %2285 = vperm.xlu0 %2284, %v2269
  %v2286 = vpop.permute.xlu0 %2285
  %2289 = vset.pattern.permute.xlu0 0
  %2290 = vperm.xlu0 %2289, %v2270
  %v2291 = vpop.permute.xlu0 %2290
  %2294 = vset.pattern.permute.xlu0 0
  %2295 = vperm.xlu0 %2294, %v2271
  %v2296 = vpop.permute.xlu0 %2295
  %2299 = vset.pattern.permute.xlu0 0
  %2300 = vperm.xlu0 %2299, %v2272
  %v2301 = vpop.permute.xlu0 %2300
  %2304 = vset.pattern.permute.xlu0 0
  %2305 = vperm.xlu0 %2304, %v2273
  %v2306 = vpop.permute.xlu0 %2305
  %2309 = vset.pattern.permute.xlu0 0
  %2310 = vperm.xlu0 %2309, %v2274
  %v2311 = vpop.permute.xlu0 %2310
  %2314 = vset.pattern.permute.xlu0 0
  %2315 = vperm.xlu0 %2314, %v2275
  %v2316 = vpop.permute.xlu0 %2315
  %2319 = vset.pattern.permute.xlu0 0
  %2320 = vperm.xlu0 %2319, %v2276
  %v2321 = vpop.permute.xlu0 %2320
  %2324 = vset.pattern.permute.xlu0 0
  %2325 = vperm.xlu0 %2324, %v2277
  %v2326 = vpop.permute.xlu0 %2325
  %v2328 = vmul.f32 %v2281, %v1527
  %v2329 = vmul.f32 %v2286, %v1530
  %v2330 = vmul.f32 %v2291, %v1535
  %v2331 = vmul.f32 %v2296, %v1538
  %v2332 = vmul.f32 %v2301, %v1543
  %v2333 = vmul.f32 %v2306, %v1546
  %v2334 = vmul.f32 %v2311, %v1551
  %v2335 = vmul.f32 %v2316, %v1554
  %v2336 = vmul.f32 %v2321, %v1559
  %v2337 = vmul.f32 %v2326, %v1562
  %v2338 = vsel %vm107, %v2328, 0.0
  %v2339 = vrot.slane %v2338, 4
  %v2340 = vadd.f32 %v2338, %v2339
  %v2341 = vrot.slane %v2340, 2
  %v2342 = vadd.f32 %v2340, %v2341
  %v2343 = vrot.slane %v2342, 1
  %v2344 = vadd.f32 %v2342, %v2343
  %v2345 = vsel %vm107, %v2329, 0.0
  %v2346 = vrot.slane %v2345, 4
  %v2347 = vadd.f32 %v2345, %v2346
  %v2348 = vrot.slane %v2347, 2
  %v2349 = vadd.f32 %v2347, %v2348
  %v2350 = vrot.slane %v2349, 1
  %v2351 = vadd.f32 %v2349, %v2350
  %v2352 = vsel %vm107, %v2330, 0.0
  %v2353 = vrot.slane %v2352, 4
  %v2354 = vadd.f32 %v2352, %v2353
  %v2355 = vrot.slane %v2354, 2
  %v2356 = vadd.f32 %v2354, %v2355
  %v2357 = vrot.slane %v2356, 1
  %v2358 = vadd.f32 %v2356, %v2357
  %v2359 = vsel %vm107, %v2331, 0.0
  %v2360 = vrot.slane %v2359, 4
  %v2361 = vadd.f32 %v2359, %v2360
  %v2362 = vrot.slane %v2361, 2
  %v2363 = vadd.f32 %v2361, %v2362
  %v2364 = vrot.slane %v2363, 1
  %v2365 = vadd.f32 %v2363, %v2364
  %v2366 = vsel %vm107, %v2332, 0.0
  %v2367 = vrot.slane %v2366, 4
  %v2368 = vadd.f32 %v2366, %v2367
  %v2369 = vrot.slane %v2368, 2
  %v2370 = vadd.f32 %v2368, %v2369
  %v2371 = vrot.slane %v2370, 1
  %v2372 = vadd.f32 %v2370, %v2371
  %v2373 = vsel %vm107, %v2333, 0.0
  %v2374 = vrot.slane %v2373, 4
  %v2375 = vadd.f32 %v2373, %v2374
  %v2376 = vrot.slane %v2375, 2
  %v2377 = vadd.f32 %v2375, %v2376
  %v2378 = vrot.slane %v2377, 1
  %v2379 = vadd.f32 %v2377, %v2378
  %v2380 = vsel %vm107, %v2334, 0.0
  %v2381 = vrot.slane %v2380, 4
  %v2382 = vadd.f32 %v2380, %v2381
  %v2383 = vrot.slane %v2382, 2
  %v2384 = vadd.f32 %v2382, %v2383
  %v2385 = vrot.slane %v2384, 1
  %v2386 = vadd.f32 %v2384, %v2385
  %v2387 = vsel %vm107, %v2335, 0.0
  %v2388 = vrot.slane %v2387, 4
  %v2389 = vadd.f32 %v2387, %v2388
  %v2390 = vrot.slane %v2389, 2
  %v2391 = vadd.f32 %v2389, %v2390
  %v2392 = vrot.slane %v2391, 1
  %v2393 = vadd.f32 %v2391, %v2392
  %v2394 = vsel %vm107, %v2336, 0.0
  %v2395 = vrot.slane %v2394, 4
  %v2396 = vadd.f32 %v2394, %v2395
  %v2397 = vrot.slane %v2396, 2
  %v2398 = vadd.f32 %v2396, %v2397
  %v2399 = vrot.slane %v2398, 1
  %v2400 = vadd.f32 %v2398, %v2399
  %v2401 = vsel %vm107, %v2337, 0.0
  %v2402 = vrot.slane %v2401, 4
  %v2403 = vadd.f32 %v2401, %v2402
  %v2404 = vrot.slane %v2403, 2
  %v2405 = vadd.f32 %v2403, %v2404
  %v2406 = vrot.slane %v2405, 1
  %v2407 = vadd.f32 %v2405, %v2406
  %v2408 = vpack.c.bf16 %v2344, %v2344
  %v2409 = vpack.c.bf16 %v2351, %v2351
  %v2410 = vpack.c.bf16 %v2358, %v2358
  %v2411 = vpack.c.bf16 %v2365, %v2365
  %v2412 = vpack.c.bf16 %v2372, %v2372
  %v2413 = vpack.c.bf16 %v2379, %v2379
  %v2414 = vpack.c.bf16 %v2386, %v2386
  %v2415 = vpack.c.bf16 %v2393, %v2393
  %v2416 = vpack.c.bf16 %v2400, %v2400
  %v2417 = vpack.c.bf16 %v2407, %v2407
  %v2418 = vld [vmem:[%s9] sm:$0xf]
  %v2419 = vld [vmem:[%s9 + $0x4] sm:$0xf]
  %v2420 = vld [vmem:[%s9 + $0x8] sm:$0xf]
  %v2421 = vld [vmem:[%s9 + $0xc] sm:$0xf]
  %v2422 = vpack.c.bf16 %v1801, %v1801
  %v2423 = vpack.c.bf16 %v1802, %v1802
  %v2424 = vpack.c.bf16 %v1803, %v1803
  %v2425 = vpack.c.bf16 %v1804, %v1804
  %v2426 = vpack.c.bf16 %v1805, %v1805
  %v2427 = vpack.c.bf16 %v1806, %v1806
  %v2428 = vpack.c.bf16 %v1807, %v1807
  %v2429 = vpack.c.bf16 %v1808, %v1808
  %v2430 = vpack.c.bf16 %v1809, %v1809
  %v2431 = vpack.c.bf16 %v1810, %v1810
  %v2432 = vld [vmem:[%s10] sm:$0xf]
  %v2433 = vld [vmem:[%s10 + $0x4] sm:$0xf]
  %v2434 = vld [vmem:[%s10 + $0x8] sm:$0xf]
  %v2435 = vld [vmem:[%s10 + $0xc] sm:$0xf]
  %v2446 = vunpack.c.l.b16 %v2422
  %v2447 = vunpack.c.l.b16 %v2423
  %v2448 = vunpack.c.l.b16 %v2424
  %v2449 = vunpack.c.l.b16 %v2425
  %v2450 = vunpack.c.l.b16 %v2426
  %v2451 = vunpack.c.l.b16 %v2427
  %v2452 = vunpack.c.l.b16 %v2428
  %v2453 = vunpack.c.l.b16 %v2429
  %v2454 = vunpack.c.l.b16 %v2430
  %v2455 = vunpack.c.l.b16 %v2431
  %v2456 = vsel %vm2012, %v2447, %v2446
  %v2457 = vsel %vm2014, %v2448, %v2456
  %v2458 = vsel %vm2016, %v2449, %v2457
  %v2459 = vsel %vm2018, %v2450, %v2458
  %v2460 = vsel %vm2020, %v2451, %v2459
  %v2461 = vsel %vm2022, %v2452, %v2460
  %v2462 = vsel %vm2024, %v2453, %v2461
  %v2463 = vsel %vm2012, %v2455, %v2454
  %v2464 = vpack.c.b16 %v2463, %v2462
  %v2469 = vunpack.c.l.b16 %v2432
  %v2470 = vunpack.c.l.b16 %v2433
  %v2471 = vunpack.c.l.b16 %v2434
  %v2472 = vunpack.c.l.b16 %v2435
  %v2473 = vpack.c.b16 %v2470, %v2469
  %v2474 = vpack.c.b16 %v2472, %v2471
  %v2478 = vsel %vm107, %v2464, 0
  %2480 = vmatprep.subr.bf16.mxu0 0
  %2481 = vmatpush1.bf16.msra.mxu0 0
  %2482 = vmatprep.subr.bf16.mxu0 0
  %2483 = vmatpush1.bf16.msra.mxu0 0
  %2484 = vmatprep.subr.bf16.mxu0 0
  %2485 = vmatpush1.bf16.msra.mxu0 0
  %2486 = vmatprep.subr.bf16.mxu0 0
  %2487 = vmatpush1.bf16.msra.mxu0 0
  %2488 = vmatprep.subr.bf16.mxu0 0
  %2489 = vmatpush1.bf16.msra.mxu0 0
  %2490 = vmatprep.subr.bf16.mxu0 0
  %2491 = vmatpush1.bf16.msra.mxu0 0
  %2492 = vmatprep.subr.bf16.mxu0 0
  %2493 = vmatpush1.bf16.msra.mxu0 %v2474
  %2494 = vmatprep.subr.bf16.mxu0 0
  %2495 = vmatpush1.bf16.msra.mxu0 %v2473
  %2496 = vmatprep.subr.bf16.mxu0 0
  %2497 = vmatpush2.bf16.msra.mxu0 0
  %2498 = vmatprep.subr.bf16.mxu0 0
  %2499 = vmatpush2.bf16.msra.mxu0 0
  %2500 = vmatprep.subr.bf16.mxu0 0
  %2501 = vmatpush2.bf16.msra.mxu0 0
  %2502 = vmatprep.subr.bf16.mxu0 0
  %2503 = vmatpush2.bf16.msra.mxu0 0
  %2504 = vmatprep.subr.bf16.mxu0 0
  %2505 = vmatpush2.bf16.msra.mxu0 0
  %2506 = vmatprep.subr.bf16.mxu0 0
  %2507 = vmatpush2.bf16.msra.mxu0 0
  %2508 = vmatprep.subr.bf16.mxu0 0
  %2509 = vmatpush2.bf16.msra.mxu0 0
  %2510 = vmatprep.subr.bf16.mxu0 0
  %2511 = vmatpush2.bf16.msra.mxu0 0
  %2512 = vmatprep.mubr.bf16.mxu0 0
  %2513 = vmatmul.mubr.bf16.gmra.mxu0 %v2478
  %v2514 = vpop.f32.mrf.mxu0
  %v2515 = vadd.f32 0.0, %v2514
  %v2516 = vpop.f32.mrf.mxu0
  %v2517 = vpop.f32.mrf.mxu0
  %v2518 = vadd.f32 0.0, %v2517
  %v2519 = vpop.f32.mrf.mxu0
  %2520 = vdwg.mxu0
  %v2531 = vunpack.c.l.b16 %v2408
  %v2532 = vunpack.c.l.b16 %v2409
  %v2533 = vunpack.c.l.b16 %v2410
  %v2534 = vunpack.c.l.b16 %v2411
  %v2535 = vunpack.c.l.b16 %v2412
  %v2536 = vunpack.c.l.b16 %v2413
  %v2537 = vunpack.c.l.b16 %v2414
  %v2538 = vunpack.c.l.b16 %v2415
  %v2539 = vunpack.c.l.b16 %v2416
  %v2540 = vunpack.c.l.b16 %v2417
  %v2541 = vsel %vm2012, %v2532, %v2531
  %v2542 = vsel %vm2014, %v2533, %v2541
  %v2543 = vsel %vm2016, %v2534, %v2542
  %v2544 = vsel %vm2018, %v2535, %v2543
  %v2545 = vsel %vm2020, %v2536, %v2544
  %v2546 = vsel %vm2022, %v2537, %v2545
  %v2547 = vsel %vm2024, %v2538, %v2546
  %v2548 = vsel %vm2012, %v2540, %v2539
  %v2549 = vpack.c.b16 %v2548, %v2547
  %v2554 = vunpack.c.l.b16 %v2418
  %v2555 = vunpack.c.l.b16 %v2419
  %v2556 = vunpack.c.l.b16 %v2420
  %v2557 = vunpack.c.l.b16 %v2421
  %v2558 = vpack.c.b16 %v2555, %v2554
  %v2559 = vpack.c.b16 %v2557, %v2556
  %v2563 = vsel %vm107, %v2549, 0
  %2565 = vmatprep.subr.bf16.mxu0 0
  %2566 = vmatpush1.bf16.msra.mxu0 0
  %2567 = vmatprep.subr.bf16.mxu0 0
  %2568 = vmatpush1.bf16.msra.mxu0 0
  %2569 = vmatprep.subr.bf16.mxu0 0
  %2570 = vmatpush1.bf16.msra.mxu0 0
  %2571 = vmatprep.subr.bf16.mxu0 0
  %2572 = vmatpush1.bf16.msra.mxu0 0
  %2573 = vmatprep.subr.bf16.mxu0 0
  %2574 = vmatpush1.bf16.msra.mxu0 0
  %2575 = vmatprep.subr.bf16.mxu0 0
  %2576 = vmatpush1.bf16.msra.mxu0 0
  %2577 = vmatprep.subr.bf16.mxu0 0
  %2578 = vmatpush1.bf16.msra.mxu0 %v2559
  %2579 = vmatprep.subr.bf16.mxu0 0
  %2580 = vmatpush1.bf16.msra.mxu0 %v2558
  %2581 = vmatprep.subr.bf16.mxu0 0
  %2582 = vmatpush2.bf16.msra.mxu0 0
  %2583 = vmatprep.subr.bf16.mxu0 0
  %2584 = vmatpush2.bf16.msra.mxu0 0
  %2585 = vmatprep.subr.bf16.mxu0 0
  %2586 = vmatpush2.bf16.msra.mxu0 0
  %2587 = vmatprep.subr.bf16.mxu0 0
  %2588 = vmatpush2.bf16.msra.mxu0 0
  %2589 = vmatprep.subr.bf16.mxu0 0
  %2590 = vmatpush2.bf16.msra.mxu0 0
  %2591 = vmatprep.subr.bf16.mxu0 0
  %2592 = vmatpush2.bf16.msra.mxu0 0
  %2593 = vmatprep.subr.bf16.mxu0 0
  %2594 = vmatpush2.bf16.msra.mxu0 0
  %2595 = vmatprep.subr.bf16.mxu0 0
  %2596 = vmatpush2.bf16.msra.mxu0 0
  %2597 = vmatprep.mubr.bf16.mxu0 0
  %2598 = vmatmul.mubr.bf16.gmra.mxu0 %v2563
  %v2599 = vpop.f32.mrf.mxu0
  %v2600 = vadd.f32 %v2515, %v2599
  %v2601 = vpop.f32.mrf.mxu0
  %v2602 = vpop.f32.mrf.mxu0
  %v2603 = vadd.f32 %v2518, %v2602
  %v2604 = vpop.f32.mrf.mxu0
  %2605 = vdwg.mxu0
  %v2606 = vld [vmem:[%s11] sm:$0x1]
  %v2608 = vlaneseq
  %v2609 = vshrl.u32 %v2608, 7
  %v2610 = vsub.s32 0, %v2609
  %v2611 = vrot.slane %v2606, %v2610
  %v2613 = vadd.f32 %v2600, %v2611
  %v2614 = vadd.f32 %v2603, %v2611
  %v2615 = vmax.f32 %v2613, 0.0
  %v2616 = vmax.f32 %v2614, 0.0
  %v2617 = vpack.c.bf16 %v2616, %v2615
  %v2618 = vld [vmem:[%s12] sm:$0xf]
  %v2619 = vld [vmem:[%s12 + $0x4] sm:$0xf]
  %v2620 = vld [vmem:[%s12 + $0x8] sm:$0xf]
  %v2621 = vld [vmem:[%s12 + $0xc] sm:$0xf]
  %v2622 = vld [vmem:[%s13] sm:$0x1]
  %v2624 = vlaneseq
  %v2625 = vshrl.u32 %v2624, 7
  %v2626 = vsub.s32 0, %v2625
  %v2627 = vrot.slane %v2622, %v2626
  %v2633 = vunpack.c.l.b16 %v2618
  %v2634 = vunpack.c.l.b16 %v2619
  %v2635 = vunpack.c.l.b16 %v2620
  %v2636 = vunpack.c.l.b16 %v2621
  %v2637 = vpack.c.b16 %v2634, %v2633
  %v2638 = vpack.c.b16 %v2636, %v2635
  %v2642 = vsel %vm107, %v2617, 0
  %2644 = vmatprep.subr.bf16.mxu0 0
  %2645 = vmatpush1.bf16.msra.mxu0 0
  %2646 = vmatprep.subr.bf16.mxu0 0
  %2647 = vmatpush1.bf16.msra.mxu0 0
  %2648 = vmatprep.subr.bf16.mxu0 0
  %2649 = vmatpush1.bf16.msra.mxu0 0
  %2650 = vmatprep.subr.bf16.mxu0 0
  %2651 = vmatpush1.bf16.msra.mxu0 0
  %2652 = vmatprep.subr.bf16.mxu0 0
  %2653 = vmatpush1.bf16.msra.mxu0 0
  %2654 = vmatprep.subr.bf16.mxu0 0
  %2655 = vmatpush1.bf16.msra.mxu0 0
  %2656 = vmatprep.subr.bf16.mxu0 0
  %2657 = vmatpush1.bf16.msra.mxu0 %v2638
  %2658 = vmatprep.subr.bf16.mxu0 0
  %2659 = vmatpush1.bf16.msra.mxu0 %v2637
  %2660 = vmatprep.subr.bf16.mxu0 0
  %2661 = vmatpush2.bf16.msra.mxu0 0
  %2662 = vmatprep.subr.bf16.mxu0 0
  %2663 = vmatpush2.bf16.msra.mxu0 0
  %2664 = vmatprep.subr.bf16.mxu0 0
  %2665 = vmatpush2.bf16.msra.mxu0 0
  %2666 = vmatprep.subr.bf16.mxu0 0
  %2667 = vmatpush2.bf16.msra.mxu0 0
  %2668 = vmatprep.subr.bf16.mxu0 0
  %2669 = vmatpush2.bf16.msra.mxu0 0
  %2670 = vmatprep.subr.bf16.mxu0 0
  %2671 = vmatpush2.bf16.msra.mxu0 0
  %2672 = vmatprep.subr.bf16.mxu0 0
  %2673 = vmatpush2.bf16.msra.mxu0 0
  %2674 = vmatprep.subr.bf16.mxu0 0
  %2675 = vmatpush2.bf16.msra.mxu0 0
  %2676 = vmatprep.mubr.bf16.mxu0 0
  %2677 = vmatmul.mubr.bf16.gmra.mxu0 %v2642
  %v2678 = vpop.f32.mrf.mxu0
  %v2679 = vadd.f32 %v2627, %v2678
  %v2680 = vpop.f32.mrf.mxu0
  %v2681 = vpop.f32.mrf.mxu0
  %v2682 = vadd.f32 %v2627, %v2681
  %v2683 = vpop.f32.mrf.mxu0
  %2684 = vdwg.mxu0
  %v2685 = vmax.f32 %v2679, 0.0
  %v2686 = vmax.f32 %v2682, 0.0
  %v2687 = vld [vmem:[%s14] sm:$0x1]
  %v2689 = vlaneseq
  %v2690 = vshrl.u32 %v2689, 7
  %v2691 = vsub.s32 0, %v2690
  %v2692 = vrot.slane %v2687, %v2691
  %v2694 = vmul.f32 %v2685, %v2692
  %v2695 = vmul.f32 %v2686, %v2692
  %v2696 = vsel %vm107, %v2694, 0.0
  %2697 = vadd.xlane.f32.xlu0 %v2696
  %v2698 = vpop.xlane.xlu0 %2697
  %vm2699 = vcmask 254976
  %v2700 = vsel %vm2699, %v2695, 0.0
  %2701 = vadd.xlane.f32.xlu0 %v2700
  %v2702 = vpop.xlane.xlu0 %2701
  %v2703 = vld [vmem:[#allocation2] sm:$0x1]
  %2705 = vset.pattern.permute.xlu0 0
  %2706 = vperm.xlu0 %2705, %v2703
  %v2707 = vpop.permute.xlu0 %2706
  %v2709 = vlaneseq
  %v2710 = vshrl.u32 %v2709, 7
  %v2711 = vsub.s32 0, %v2710
  %v2712 = vrot.slane %v2707, %v2711
  %v2713 = vadd.f32 %v2698, %v2712
  %v2714 = vadd.f32 %v2702, %v2712
  %v2717 = vlaneseq
  %v2718 = vshrl.u32 %v2717, 7
  %v2719 = vsub.s32 %v1971, %v2718
  %v2720 = vrot.slane %v2713, %v2719
  %v2721 = vadd.s32 %v1971, 4294967288
  %v2722 = vlaneseq
  %v2723 = vshrl.u32 %v2722, 7
  %v2724 = vsub.s32 %v2721, %v2723
  %v2725 = vrot.slane %v2714, %v2724
  %vm2726 = vcmask 130112
  %v2727 = vsel %vm2726, %v2725, %v2720
  %vm2729 = vcmask 73728
  %2730 = vst.msk [vmem:[%s16] sm:$0x1] %vm2729, %v2727
  // Predicated region
  $region66: #{trans_model_forward.1} parent=0 // pred_check
    _
  $region67: #{trans_model_forward.1} parent=0 // pred_check_branch
    %2732 = sbr.rel (0) target = $region69
  $region68: #{trans_model_forward.1} parent=0 // pred_region
    _
  $region69: #{trans_model_forward.1} parent=0 // pred_fallthru
    _
  // Predicated region
  $region70: #{trans_model_forward.1} parent=0 // pred_check
    _
  $region71: #{trans_model_forward.1} parent=0 // pred_check_branch
    %2734 = sbr.rel (0) target = $region73
  $region72: #{trans_model_forward.1} parent=0 // pred_region
    _
  $region73: #{trans_model_forward.1} parent=0 // pred_fallthru
    _

</llo_original>
